<compile_context>
chip_gen: v7x
topology: tpu7x:2x2x1
jax: 0.10.0
libtpu: 0.0.40
codegen_flags: <defaults>
</compile_context>

<pallas_src>
import jax
import jax.numpy as jnp
from jax.experimental import pallas as pl
from jax.experimental.pallas import tpu as pltpu

NUM_ROUTING_ITERATIONS = 3


def _make_capsule_kernel(num_iterations):
    def kernel(x_ref, w_ref, g_ref, o_ref):
        # x_ref: (Bt, R, I)  f32      input poses for this batch tile
        # w_ref: (I, R, F)   bf16/f32 folded route weights, resident across steps
        # g_ref: (F, F)      f32      per-capsule block-of-ones selection matrix
        # o_ref: (Bt, F)     f32      squashed capsule outputs (lane-dense)
        Bt, R, I = x_ref.shape
        F = g_ref.shape[0]

        x = x_ref[...]                                   # f32
        G = g_ref[...]

        # priors[b, r, f] = sum_i x[b, r, i] * w[i, r, f]
        # I (= in_channels) is tiny, so an unrolled VPU FMA over full (R, F)
        # vregs beats R one-row MXU matmuls and produces the (Bt, R, F) layout
        # directly: R on sublanes, F lane-dense.
        priors = None
        for i in range(I):
            wi = w_ref[i].astype(jnp.float32)            # (R, F)
            xi = x[:, :, i:i + 1]                        # (Bt, R, 1) lane-broadcast
            term = xi * wi[None, :, :]                   # (Bt, R, F)
            priors = term if priors is None else priors + term

        def squash(s):
            # s: (Bt, F).  Per-capsule squared norm broadcast back over that
            # capsule's O lanes with ONE fused 0/1 selection matmul (G = E^T E).
            sqn = jnp.dot(s * s, G, preferred_element_type=jnp.float32)
            # identical math to (sqn/(1+sqn)) * s / sqrt(sqn), without the 0/0 path
            return s * jnp.sqrt(sqn) / (1.0 + sqn)

        # --- routing iteration 0: logits are all zero -> probs == 1/R exactly.
        s = jnp.sum(priors, axis=1) * (1.0 / R)          # (Bt, F)
        outputs = squash(s)

        logits = jnp.zeros((Bt, R, F), jnp.float32)
        for _ in range(1, num_iterations):
            # delta, folded on F: per-capsule sum over its O lanes of
            # priors*outputs, replicated back across those lanes by G.
            tmp = priors * outputs[:, None, :]           # (Bt, R, F)
            delta = jnp.dot(
                tmp.reshape(Bt * R, F), G, preferred_element_type=jnp.float32
            ).reshape(Bt, R, F)
            logits = logits + delta

            # softmax over route nodes R (the sublane axis).
            m = jnp.max(logits, axis=1, keepdims=True)
            e = jnp.exp(logits - m)
            probs = e / jnp.sum(e, axis=1, keepdims=True)

            s = jnp.sum(probs * priors, axis=1)          # (Bt, F)
            outputs = squash(s)

        o_ref[...] = outputs.astype(o_ref.dtype)

    return kernel


def _pick_batch_tile(B, R, F_pad, budget_bytes=8 * 2 ** 20):
    """Largest batch tile whose routing temporaries fit a conservative VMEM budget.

    Output blocks are (Bt, F_pad): the sublane dim must be a multiple of 8 or equal
    the full batch, so candidates are multiple-of-8 divisors of B (fallback: B).
    Prefer leaving >=2 grid steps when possible so v7x's second TensorCore gets work.
    """
    per_batch_elem = 5 * R * F_pad * 4        # ~5 live (Bt, R, F) f32 temporaries
    cap = max(1, budget_bytes // per_batch_elem)
    mult8 = [d for d in range(8, B + 1, 8) if B % d == 0]
    fitting = [d for d in mult8 if d <= cap]
    if fitting:
        smaller = [d for d in fitting if d < B]
        return max(smaller) if smaller else max(fitting)
    if mult8:
        return min(mult8)
    return B


def capsule_layer_routing(x, route_weights,
                          num_iterations=NUM_ROUTING_ITERATIONS,
                          param_dtype=jnp.bfloat16):
    """x: (B, R, I) f32, route_weights: (C, R, I, O) f32 -> (C, B, 1, 1, O) f32."""
    B, R, I = x.shape
    C, R2, I2, O = route_weights.shape
    assert (R2, I2) == (R, I)

    F_real = C * O
    F_pad = ((F_real + 127) // 128) * 128     # lane-dense working arrays and stores

    Bt = _pick_batch_tile(B, R, F_pad)
    n_b = B // Bt

    # Wrapper-side layout plumbing (one-time XLA work, outside the kernel):
    #   w_fold[i, r, c*O + o] = route_weights[c, r, i, o], zero-padded to F_pad lanes.
    w_fold = jnp.transpose(route_weights, (2, 1, 0, 3)).reshape(I, R, F_real)
    if F_pad != F_real:
        w_fold = jnp.pad(w_fold, ((0, 0), (0, 0), (0, F_pad - F_real)))
    w_fold = w_fold.astype(param_dtype)

    # Per-capsule selection matrix G = E^T E (block-of-ones; zero on pad lanes),
    # hoisted out of the kernel and passed as a small resident VMEM constant.
    lane = jnp.arange(F_pad)
    same_cap = (lane[:, None] // O) == (lane[None, :] // O)
    real = lane < F_real
    G = (same_cap & real[:, None] & real[None, :]).astype(jnp.float32)

    w_bytes = jnp.dtype(param_dtype).itemsize
    est = (2 * Bt * R * I * 4                 # x block (double-buffered)
           + 2 * I * R * F_pad * w_bytes      # W block
           + 2 * F_pad * F_pad * 4            # G block
           + 2 * Bt * F_pad * 4               # output block
           + 6 * Bt * R * F_pad * 4)          # routing temporaries
    vmem_limit = int(min(48 * 2 ** 20, max(32 * 2 ** 20, 2 * est)))

    out2d = pl.pallas_call(
        _make_capsule_kernel(num_iterations),
        out_shape=jax.ShapeDtypeStruct((B, F_pad), jnp.float32),
        grid_spec=pltpu.PrefetchScalarGridSpec(
            num_scalar_prefetch=0,
            grid=(n_b,),                                            # batch tiles only
            in_specs=[
                pl.BlockSpec((Bt, R, I), lambda b: (b, 0, 0)),      # streamed per tile
                pl.BlockSpec((I, R, F_pad), lambda b: (0, 0, 0)),   # W: fetched once
                pl.BlockSpec((F_pad, F_pad), lambda b: (0, 0)),     # G: fetched once
            ],
            out_specs=pl.BlockSpec((Bt, F_pad), lambda b: (b, 0)),  # lane-dense store
        ),
        compiler_params=pltpu.CompilerParams(
            dimension_semantics=("parallel",),
            vmem_limit_bytes=vmem_limit,
        ),
    )(x.astype(jnp.float32), w_fold, G)

    # (B, F_pad) -> drop pad lanes -> (C, B, 1, 1, O), matching the PyTorch output.
    out = out2d[:, :F_real].reshape(B, C, O)
    return jnp.transpose(out, (1, 0, 2)).reshape(C, B, 1, 1, O)


def _reference(x, w, num_iterations=NUM_ROUTING_ITERATIONS):
    # Pure-JAX transcription of the PyTorch forward (routing branch).
    priors = jnp.einsum("bri,crio->cbro", x, w,
                        precision=jax.lax.Precision.HIGHEST)[:, :, :, None, :]
    logits = jnp.zeros_like(priors)
    outputs = None
    for i in range(num_iterations):
        probs = jax.nn.softmax(logits, axis=2)
        s = jnp.sum(probs * priors, axis=2, keepdims=True)
        sqn = jnp.sum(s * s, axis=-1, keepdims=True)
        outputs = (sqn / (1.0 + sqn)) * s / jnp.sqrt(sqn)
        if i != num_iterations - 1:
            logits = logits + jnp.sum(priors * outputs, axis=-1, keepdims=True)
    return outputs  # (C, B, 1, 1, O)


if __name__ == "__main__":
    # Small, module-consistent shapes:
    #   num_capsules C=4, num_route_nodes R=64, in_channels I=8,
    #   out_channels O=16, batch B=2
    C, R, I, O, B = 4, 64, 8, 16, 2

    key = jax.random.PRNGKey(0)
    kx, kw = jax.random.split(key)
    x = jax.random.normal(kx, (B, R, I), dtype=jnp.float32)
    route_weights = jax.random.normal(kw, (C, R, I, O), dtype=jnp.float32)

    ref = _reference(x, route_weights)

    # f32-weight run: the only rounding is DEFAULT-precision MXU on the 0/1
    # selection matmuls (same sources as the previously validated kernel).
    out_f32 = jax.block_until_ready(
        capsule_layer_routing(x, route_weights, param_dtype=jnp.float32))
    assert out_f32.shape == (C, B, 1, 1, O), out_f32.shape
    err_f32 = float(jnp.max(jnp.abs(out_f32 - ref)))
    assert err_f32 < 2e-2, err_f32

    # bf16-weight run (production default): adds ~2^-9 relative weight
    # quantization; structural errors would be O(0.1-1).
    out_bf16 = jax.block_until_ready(capsule_layer_routing(x, route_weights))
    assert out_bf16.shape == (C, B, 1, 1, O), out_bf16.shape
    err_bf16 = float(jnp.max(jnp.abs(out_bf16 - ref)))
    assert err_bf16 < 6e-2, err_bf16

    print("KERNEL_OK")
</pallas_src>

<mosaic_0001>
module attributes {stable_mosaic.version = 11 : i64} {
  func.func @kernel(%arg0: i32, %arg1: memref<2x64x8xf32, #tpu.memory_space<vmem>>, %arg2: memref<8x64x128xf32, #tpu.memory_space<vmem>>, %arg3: memref<128x128xf32, #tpu.memory_space<vmem>>, %arg4: memref<2x128xf32, #tpu.memory_space<vmem>>) attributes {dimension_semantics = [#tpu.dimension_semantics<parallel>], iteration_bounds = array<i64: 1>, scalar_prefetch = 0 : i64, scratch_operands = 0 : i64, tpu.core_type = #tpu.core_type<tc>, window_params = [{transform_indices = @transform_0, window_bounds = array<i64: 2, 64, 8>}, {pipeline_mode = #tpu.pipeline_mode<synchronous>, transform_indices = @transform_1, window_bounds = array<i64: 8, 64, 128>}, {pipeline_mode = #tpu.pipeline_mode<synchronous>, transform_indices = @transform_2, window_bounds = array<i64: 128, 128>}, {transform_indices = @transform_3, window_bounds = array<i64: 2, 128>}]} {
    %c0 = arith.constant 0 : index
    %c0_0 = arith.constant 0 : index
    %c0_1 = arith.constant 0 : index
    %0 = vector.load %arg1[%c0, %c0_0, %c0_1] : memref<2x64x8xf32, #tpu.memory_space<vmem>>, vector<2x64x8xf32>
    %c0_2 = arith.constant 0 : index
    %c0_3 = arith.constant 0 : index
    %1 = vector.load %arg3[%c0_2, %c0_3] : memref<128x128xf32, #tpu.memory_space<vmem>>, vector<128x128xf32>
    %c0_4 = arith.constant 0 : index
    %c0_5 = arith.constant 0 : index
    %c0_6 = arith.constant 0 : index
    %2 = vector.load %arg2[%c0_4, %c0_5, %c0_6] : memref<8x64x128xf32, #tpu.memory_space<vmem>>, vector<1x64x128xf32>
    %3 = vector.shape_cast %2 : vector<1x64x128xf32> to vector<64x128xf32>
    %4 = vector.extract_strided_slice %0 {offsets = [0, 0, 0], sizes = [2, 64, 1], strides = [1, 1, 1]} : vector<2x64x8xf32> to vector<2x64x1xf32>
    %5 = vector.shape_cast %3 : vector<64x128xf32> to vector<1x64x128xf32>
    %6 = vector.broadcast %4 : vector<2x64x1xf32> to vector<2x64x128xf32>
    %7 = vector.broadcast %5 : vector<1x64x128xf32> to vector<2x64x128xf32>
    %8 = arith.mulf %6, %7 : vector<2x64x128xf32>
    %c1 = arith.constant 1 : index
    %c0_7 = arith.constant 0 : index
    %c0_8 = arith.constant 0 : index
    %9 = vector.load %arg2[%c1, %c0_7, %c0_8] : memref<8x64x128xf32, #tpu.memory_space<vmem>>, vector<1x64x128xf32>
    %10 = vector.shape_cast %9 : vector<1x64x128xf32> to vector<64x128xf32>
    %11 = vector.extract_strided_slice %0 {offsets = [0, 0, 1], sizes = [2, 64, 1], strides = [1, 1, 1]} : vector<2x64x8xf32> to vector<2x64x1xf32>
    %12 = vector.shape_cast %10 : vector<64x128xf32> to vector<1x64x128xf32>
    %13 = vector.broadcast %11 : vector<2x64x1xf32> to vector<2x64x128xf32>
    %14 = vector.broadcast %12 : vector<1x64x128xf32> to vector<2x64x128xf32>
    %15 = arith.mulf %13, %14 : vector<2x64x128xf32>
    %16 = arith.addf %8, %15 : vector<2x64x128xf32>
    %c2 = arith.constant 2 : index
    %c0_9 = arith.constant 0 : index
    %c0_10 = arith.constant 0 : index
    %17 = vector.load %arg2[%c2, %c0_9, %c0_10] : memref<8x64x128xf32, #tpu.memory_space<vmem>>, vector<1x64x128xf32>
    %18 = vector.shape_cast %17 : vector<1x64x128xf32> to vector<64x128xf32>
    %19 = vector.extract_strided_slice %0 {offsets = [0, 0, 2], sizes = [2, 64, 1], strides = [1, 1, 1]} : vector<2x64x8xf32> to vector<2x64x1xf32>
    %20 = vector.shape_cast %18 : vector<64x128xf32> to vector<1x64x128xf32>
    %21 = vector.broadcast %19 : vector<2x64x1xf32> to vector<2x64x128xf32>
    %22 = vector.broadcast %20 : vector<1x64x128xf32> to vector<2x64x128xf32>
    %23 = arith.mulf %21, %22 : vector<2x64x128xf32>
    %24 = arith.addf %16, %23 : vector<2x64x128xf32>
    %c3 = arith.constant 3 : index
    %c0_11 = arith.constant 0 : index
    %c0_12 = arith.constant 0 : index
    %25 = vector.load %arg2[%c3, %c0_11, %c0_12] : memref<8x64x128xf32, #tpu.memory_space<vmem>>, vector<1x64x128xf32>
    %26 = vector.shape_cast %25 : vector<1x64x128xf32> to vector<64x128xf32>
    %27 = vector.extract_strided_slice %0 {offsets = [0, 0, 3], sizes = [2, 64, 1], strides = [1, 1, 1]} : vector<2x64x8xf32> to vector<2x64x1xf32>
    %28 = vector.shape_cast %26 : vector<64x128xf32> to vector<1x64x128xf32>
    %29 = vector.broadcast %27 : vector<2x64x1xf32> to vector<2x64x128xf32>
    %30 = vector.broadcast %28 : vector<1x64x128xf32> to vector<2x64x128xf32>
    %31 = arith.mulf %29, %30 : vector<2x64x128xf32>
    %32 = arith.addf %24, %31 : vector<2x64x128xf32>
    %c4 = arith.constant 4 : index
    %c0_13 = arith.constant 0 : index
    %c0_14 = arith.constant 0 : index
    %33 = vector.load %arg2[%c4, %c0_13, %c0_14] : memref<8x64x128xf32, #tpu.memory_space<vmem>>, vector<1x64x128xf32>
    %34 = vector.shape_cast %33 : vector<1x64x128xf32> to vector<64x128xf32>
    %35 = vector.extract_strided_slice %0 {offsets = [0, 0, 4], sizes = [2, 64, 1], strides = [1, 1, 1]} : vector<2x64x8xf32> to vector<2x64x1xf32>
    %36 = vector.shape_cast %34 : vector<64x128xf32> to vector<1x64x128xf32>
    %37 = vector.broadcast %35 : vector<2x64x1xf32> to vector<2x64x128xf32>
    %38 = vector.broadcast %36 : vector<1x64x128xf32> to vector<2x64x128xf32>
    %39 = arith.mulf %37, %38 : vector<2x64x128xf32>
    %40 = arith.addf %32, %39 : vector<2x64x128xf32>
    %c5 = arith.constant 5 : index
    %c0_15 = arith.constant 0 : index
    %c0_16 = arith.constant 0 : index
    %41 = vector.load %arg2[%c5, %c0_15, %c0_16] : memref<8x64x128xf32, #tpu.memory_space<vmem>>, vector<1x64x128xf32>
    %42 = vector.shape_cast %41 : vector<1x64x128xf32> to vector<64x128xf32>
    %43 = vector.extract_strided_slice %0 {offsets = [0, 0, 5], sizes = [2, 64, 1], strides = [1, 1, 1]} : vector<2x64x8xf32> to vector<2x64x1xf32>
    %44 = vector.shape_cast %42 : vector<64x128xf32> to vector<1x64x128xf32>
    %45 = vector.broadcast %43 : vector<2x64x1xf32> to vector<2x64x128xf32>
    %46 = vector.broadcast %44 : vector<1x64x128xf32> to vector<2x64x128xf32>
    %47 = arith.mulf %45, %46 : vector<2x64x128xf32>
    %48 = arith.addf %40, %47 : vector<2x64x128xf32>
    %c6 = arith.constant 6 : index
    %c0_17 = arith.constant 0 : index
    %c0_18 = arith.constant 0 : index
    %49 = vector.load %arg2[%c6, %c0_17, %c0_18] : memref<8x64x128xf32, #tpu.memory_space<vmem>>, vector<1x64x128xf32>
    %50 = vector.shape_cast %49 : vector<1x64x128xf32> to vector<64x128xf32>
    %51 = vector.extract_strided_slice %0 {offsets = [0, 0, 6], sizes = [2, 64, 1], strides = [1, 1, 1]} : vector<2x64x8xf32> to vector<2x64x1xf32>
    %52 = vector.shape_cast %50 : vector<64x128xf32> to vector<1x64x128xf32>
    %53 = vector.broadcast %51 : vector<2x64x1xf32> to vector<2x64x128xf32>
    %54 = vector.broadcast %52 : vector<1x64x128xf32> to vector<2x64x128xf32>
    %55 = arith.mulf %53, %54 : vector<2x64x128xf32>
    %56 = arith.addf %48, %55 : vector<2x64x128xf32>
    %c7 = arith.constant 7 : index
    %c0_19 = arith.constant 0 : index
    %c0_20 = arith.constant 0 : index
    %57 = vector.load %arg2[%c7, %c0_19, %c0_20] : memref<8x64x128xf32, #tpu.memory_space<vmem>>, vector<1x64x128xf32>
    %58 = vector.shape_cast %57 : vector<1x64x128xf32> to vector<64x128xf32>
    %59 = vector.extract_strided_slice %0 {offsets = [0, 0, 7], sizes = [2, 64, 1], strides = [1, 1, 1]} : vector<2x64x8xf32> to vector<2x64x1xf32>
    %60 = vector.shape_cast %58 : vector<64x128xf32> to vector<1x64x128xf32>
    %61 = vector.broadcast %59 : vector<2x64x1xf32> to vector<2x64x128xf32>
    %62 = vector.broadcast %60 : vector<1x64x128xf32> to vector<2x64x128xf32>
    %63 = arith.mulf %61, %62 : vector<2x64x128xf32>
    %64 = arith.addf %56, %63 : vector<2x64x128xf32>
    %cst = arith.constant dense<0.000000e+00> : vector<2x128xf32>
    %65 = vector.multi_reduction <add>, %64, %cst [1] : vector<2x64x128xf32> to vector<2x128xf32>
    %cst_21 = arith.constant 1.562500e-02 : f32
    %66 = vector.broadcast %cst_21 : f32 to vector<2x128xf32>
    %67 = arith.mulf %65, %66 : vector<2x128xf32>
    %68 = arith.mulf %67, %67 : vector<2x128xf32>
    %cst_22 = arith.constant dense<0.000000e+00> : vector<2x128xf32>
    %69 = tpu.matmul %68, %1, %cst_22 {dimension_numbers = #tpu.dot_dimension_numbers<[1], [0], [0], [1], [0, 0, 1, 1], [], []>} : vector<2x128xf32>, vector<128x128xf32>, vector<2x128xf32> -> vector<2x128xf32>
    %70 = math.sqrt %69 : vector<2x128xf32>
    %71 = arith.mulf %67, %70 : vector<2x128xf32>
    %cst_23 = arith.constant 1.000000e+00 : f32
    %72 = vector.broadcast %cst_23 : f32 to vector<2x128xf32>
    %73 = arith.addf %72, %69 : vector<2x128xf32>
    %74 = arith.divf %71, %73 : vector<2x128xf32>
    %cst_24 = arith.constant 0.000000e+00 : f32
    %75 = vector.broadcast %cst_24 : f32 to vector<2x64x128xf32>
    %76 = vector.shape_cast %74 : vector<2x128xf32> to vector<2x1x128xf32>
    %77 = vector.broadcast %76 : vector<2x1x128xf32> to vector<2x64x128xf32>
    %78 = arith.mulf %64, %77 : vector<2x64x128xf32>
    %79 = vector.shape_cast %78 : vector<2x64x128xf32> to vector<128x128xf32>
    %cst_25 = arith.constant dense<0.000000e+00> : vector<128x128xf32>
    %80 = tpu.matmul %79, %1, %cst_25 {dimension_numbers = #tpu.dot_dimension_numbers<[1], [0], [0], [1], [0, 0, 1, 1], [], []>} : vector<128x128xf32>, vector<128x128xf32>, vector<128x128xf32> -> vector<128x128xf32>
    %81 = vector.shape_cast %80 : vector<128x128xf32> to vector<2x64x128xf32>
    %82 = arith.addf %75, %81 : vector<2x64x128xf32>
    %cst_26 = arith.constant dense<0xFF800000> : vector<2x128xf32>
    %83 = vector.multi_reduction <maximumf>, %82, %cst_26 [1] : vector<2x64x128xf32> to vector<2x128xf32>
    %84 = vector.shape_cast %83 : vector<2x128xf32> to vector<2x1x128xf32>
    %85 = vector.broadcast %84 : vector<2x1x128xf32> to vector<2x64x128xf32>
    %86 = arith.subf %82, %85 : vector<2x64x128xf32>
    %87 = math.exp %86 : vector<2x64x128xf32>
    %cst_27 = arith.constant dense<0.000000e+00> : vector<2x128xf32>
    %88 = vector.multi_reduction <add>, %87, %cst_27 [1] : vector<2x64x128xf32> to vector<2x128xf32>
    %89 = vector.shape_cast %88 : vector<2x128xf32> to vector<2x1x128xf32>
    %90 = vector.broadcast %89 : vector<2x1x128xf32> to vector<2x64x128xf32>
    %91 = arith.divf %87, %90 : vector<2x64x128xf32>
    %92 = arith.mulf %91, %64 : vector<2x64x128xf32>
    %cst_28 = arith.constant dense<0.000000e+00> : vector<2x128xf32>
    %93 = vector.multi_reduction <add>, %92, %cst_28 [1] : vector<2x64x128xf32> to vector<2x128xf32>
    %94 = arith.mulf %93, %93 : vector<2x128xf32>
    %cst_29 = arith.constant dense<0.000000e+00> : vector<2x128xf32>
    %95 = tpu.matmul %94, %1, %cst_29 {dimension_numbers = #tpu.dot_dimension_numbers<[1], [0], [0], [1], [0, 0, 1, 1], [], []>} : vector<2x128xf32>, vector<128x128xf32>, vector<2x128xf32> -> vector<2x128xf32>
    %96 = math.sqrt %95 : vector<2x128xf32>
    %97 = arith.mulf %93, %96 : vector<2x128xf32>
    %cst_30 = arith.constant 1.000000e+00 : f32
    %98 = vector.broadcast %cst_30 : f32 to vector<2x128xf32>
    %99 = arith.addf %98, %95 : vector<2x128xf32>
    %100 = arith.divf %97, %99 : vector<2x128xf32>
    %101 = vector.shape_cast %100 : vector<2x128xf32> to vector<2x1x128xf32>
    %102 = vector.broadcast %101 : vector<2x1x128xf32> to vector<2x64x128xf32>
    %103 = arith.mulf %64, %102 : vector<2x64x128xf32>
    %104 = vector.shape_cast %103 : vector<2x64x128xf32> to vector<128x128xf32>
    %cst_31 = arith.constant dense<0.000000e+00> : vector<128x128xf32>
    %105 = tpu.matmul %104, %1, %cst_31 {dimension_numbers = #tpu.dot_dimension_numbers<[1], [0], [0], [1], [0, 0, 1, 1], [], []>} : vector<128x128xf32>, vector<128x128xf32>, vector<128x128xf32> -> vector<128x128xf32>
    %106 = vector.shape_cast %105 : vector<128x128xf32> to vector<2x64x128xf32>
    %107 = arith.addf %82, %106 : vector<2x64x128xf32>
    %cst_32 = arith.constant dense<0xFF800000> : vector<2x128xf32>
    %108 = vector.multi_reduction <maximumf>, %107, %cst_32 [1] : vector<2x64x128xf32> to vector<2x128xf32>
    %109 = vector.shape_cast %108 : vector<2x128xf32> to vector<2x1x128xf32>
    %110 = vector.broadcast %109 : vector<2x1x128xf32> to vector<2x64x128xf32>
    %111 = arith.subf %107, %110 : vector<2x64x128xf32>
    %112 = math.exp %111 : vector<2x64x128xf32>
    %cst_33 = arith.constant dense<0.000000e+00> : vector<2x128xf32>
    %113 = vector.multi_reduction <add>, %112, %cst_33 [1] : vector<2x64x128xf32> to vector<2x128xf32>
    %114 = vector.shape_cast %113 : vector<2x128xf32> to vector<2x1x128xf32>
    %115 = vector.broadcast %114 : vector<2x1x128xf32> to vector<2x64x128xf32>
    %116 = arith.divf %112, %115 : vector<2x64x128xf32>
    %117 = arith.mulf %116, %64 : vector<2x64x128xf32>
    %cst_34 = arith.constant dense<0.000000e+00> : vector<2x128xf32>
    %118 = vector.multi_reduction <add>, %117, %cst_34 [1] : vector<2x64x128xf32> to vector<2x128xf32>
    %119 = arith.mulf %118, %118 : vector<2x128xf32>
    %cst_35 = arith.constant dense<0.000000e+00> : vector<2x128xf32>
    %120 = tpu.matmul %119, %1, %cst_35 {dimension_numbers = #tpu.dot_dimension_numbers<[1], [0], [0], [1], [0, 0, 1, 1], [], []>} : vector<2x128xf32>, vector<128x128xf32>, vector<2x128xf32> -> vector<2x128xf32>
    %121 = math.sqrt %120 : vector<2x128xf32>
    %122 = arith.mulf %118, %121 : vector<2x128xf32>
    %cst_36 = arith.constant 1.000000e+00 : f32
    %123 = vector.broadcast %cst_36 : f32 to vector<2x128xf32>
    %124 = arith.addf %123, %120 : vector<2x128xf32>
    %125 = arith.divf %122, %124 : vector<2x128xf32>
    %c0_37 = arith.constant 0 : index
    %c0_38 = arith.constant 0 : index
    %126 = vector.load %arg4[%c0_37, %c0_38] : memref<2x128xf32, #tpu.memory_space<vmem>>, vector<2x128xf32>
    tpu.vector_store %arg4[%c0_37, %c0_38], %125 {strides = array<i32>} : memref<2x128xf32, #tpu.memory_space<vmem>>, vector<2x128xf32>,
    return
  }
  func.func @transform_0(%arg0: i32) -> (i32, i32, i32) {
    %c0_i32 = arith.constant 0 : i32
    %c0_i32_0 = arith.constant 0 : i32
    %c0_i32_1 = arith.constant 0 : i32
    return %arg0, %c0_i32, %c0_i32_0 : i32, i32, i32
  }
  func.func @transform_1(%arg0: i32) -> (i32, i32, i32) {
    %c0_i32 = arith.constant 0 : i32
    %c0_i32_0 = arith.constant 0 : i32
    %c0_i32_1 = arith.constant 0 : i32
    %c0_i32_2 = arith.constant 0 : i32
    return %c0_i32, %c0_i32_0, %c0_i32_1 : i32, i32, i32
  }
  func.func @transform_2(%arg0: i32) -> (i32, i32) {
    %c0_i32 = arith.constant 0 : i32
    %c0_i32_0 = arith.constant 0 : i32
    %c0_i32_1 = arith.constant 0 : i32
    return %c0_i32, %c0_i32_0 : i32, i32
  }
  func.func @transform_3(%arg0: i32) -> (i32, i32) {
    %c0_i32 = arith.constant 0 : i32
    %c0_i32_0 = arith.constant 0 : i32
    return %arg0, %c0_i32 : i32, i32
  }
}

</mosaic_0001>

<llo_original>
// kernel: tpu_custom_call.1
$region0: #{tpu_custom_call.1}
  #allocation0 [shape = 'u32[]', space=smem, size = 0x4, offset = 0x4, fixed_abs, tag = 'smem constant byte address 0x4 - core index']
  #allocation1 [shape = 'u32[144,128]{1,0:T(1,128)}', space=vmem, size = 0x12000, scoped, tag = 'internal scratch']
  %s0 = inlined_call_operand.vmem [shape: f32[2,64,8], index: 0, kind: input, shape index: {}]
  %s1 = inlined_call_operand.hbm [shape: f32[8,64,128], index: 1, kind: input, shape index: {}]
  %s2 = inlined_call_operand.vmem [shape: f32[128,128], index: 2, kind: input, shape index: {}]
  %s3 = inlined_call_operand.hbm [shape: f32[2,128], index: 3, kind: output, shape index: {}]
  %s4 = sld [smem:[#allocation0]]
  $region26: #{tpu_custom_call.1} parent=0
    _
  %s6 = ssub.s32 1, %s4
  %s7 = scalar_select 0, %s6, %s4
  $region1: #{tpu_custom_call.1} parent=0
    #allocation2 [shape = 'u8[262144]{0}', space=vmem, size = 0x40000, scoped, tag = 'input window, operand 1, single buffered']
    #allocation3 [shape = 's32[1]{0}', space=sflag, size = 0x4, scoped, tag = 'scoped memory for tpu_custom_call.1']
    #allocation4 [shape = 's32[1]{0}', space=sflag, size = 0x4, scoped, tag = 'scoped memory for tpu_custom_call.1']
    #allocation5 [shape = 'u8[1024]{0}', space=vmem, size = 0x400, scoped, tag = 'output window, operand 0, single buffered']
    %8 = vsyncpa [#allocation3], 0
    %9 = vsyncpa [#allocation4], 0
    // Predicated region
    $region2: #{tpu_custom_call.1} parent=1 // pred_check
      _
    $region3: #{tpu_custom_call.1} parent=1 // pred_check_branch
      %11 = sbr.rel (0) target = $region5
    $region4: #{tpu_custom_call.1} parent=1 // pred_region
      _
    $region5: #{tpu_custom_call.1} parent=1 // pred_fallthru
      _
    // Predicated region
    $region6: #{tpu_custom_call.1} parent=1 // pred_check
      _
    $region7: #{tpu_custom_call.1} parent=1 // pred_check_branch
      %13 = sbr.rel (0) target = $region9
    $region8: #{tpu_custom_call.1} parent=1 // pred_region
      %s15 = ssub.s32 8192, 8192
      %16 = vsyncadd [#allocation3], %s15
      %s17 = sshll.u32 [#allocation2], 4
      %s18 = int_to_ptr.vmem [resolvable:$true] %s17
      %23 = dma.hbm_to_vmem [thread:$0]  %s1, 8192, %s18, [#allocation3], 128, 128, 8
    $region9: #{tpu_custom_call.1} parent=1 // pred_fallthru
      _
    // Predicated region
    $region10: #{tpu_custom_call.1} parent=1 // pred_check
      _
    $region11: #{tpu_custom_call.1} parent=1 // pred_check_branch
      %25 = sbr.rel (0) target = $region13
    $region12: #{tpu_custom_call.1} parent=1 // pred_region
      _
    $region13: #{tpu_custom_call.1} parent=1 // pred_fallthru
      _
    // Predicated region
    $region14: #{tpu_custom_call.1} parent=1 // pred_check
      _
    $region15: #{tpu_custom_call.1} parent=1 // pred_check_branch
      %27 = sbr.rel (0) target = $region17
    $region16: #{tpu_custom_call.1} parent=1 // pred_region
      %28 = dma.done [#allocation3], 8192
    $region17: #{tpu_custom_call.1} parent=1 // pred_fallthru
      _
    %v29 = vld [vmem:[%s0] sm:$0xff]
    %v30 = vld [vmem:[%s0 + $0x8] sm:$0xff]
    %v31 = vld [vmem:[%s0 + $0x10] sm:$0xff]
    %v32 = vld [vmem:[%s0 + $0x18] sm:$0xff]
    %v33 = vld [vmem:[%s0 + $0x20] sm:$0xff]
    %v34 = vld [vmem:[%s0 + $0x28] sm:$0xff]
    %v35 = vld [vmem:[%s0 + $0x30] sm:$0xff]
    %v36 = vld [vmem:[%s0 + $0x38] sm:$0xff]
    %v37 = vld [vmem:[%s0 + $0x40] sm:$0xff]
    %v38 = vld [vmem:[%s0 + $0x48] sm:$0xff]
    %v39 = vld [vmem:[%s0 + $0x50] sm:$0xff]
    %v40 = vld [vmem:[%s0 + $0x58] sm:$0xff]
    %v41 = vld [vmem:[%s0 + $0x60] sm:$0xff]
    %v42 = vld [vmem:[%s0 + $0x68] sm:$0xff]
    %v43 = vld [vmem:[%s0 + $0x70] sm:$0xff]
    %v44 = vld [vmem:[%s0 + $0x78] sm:$0xff]
    %v45 = vld [vmem:[%s2] sm:$0xff]
    %v46 = vld [vmem:[%s2 + $0x8] sm:$0xff]
    %v47 = vld [vmem:[%s2 + $0x10] sm:$0xff]
    %v48 = vld [vmem:[%s2 + $0x18] sm:$0xff]
    %v49 = vld [vmem:[%s2 + $0x20] sm:$0xff]
    %v50 = vld [vmem:[%s2 + $0x28] sm:$0xff]
    %v51 = vld [vmem:[%s2 + $0x30] sm:$0xff]
    %v52 = vld [vmem:[%s2 + $0x38] sm:$0xff]
    %v53 = vld [vmem:[%s2 + $0x40] sm:$0xff]
    %v54 = vld [vmem:[%s2 + $0x48] sm:$0xff]
    %v55 = vld [vmem:[%s2 + $0x50] sm:$0xff]
    %v56 = vld [vmem:[%s2 + $0x58] sm:$0xff]
    %v57 = vld [vmem:[%s2 + $0x60] sm:$0xff]
    %v58 = vld [vmem:[%s2 + $0x68] sm:$0xff]
    %v59 = vld [vmem:[%s2 + $0x70] sm:$0xff]
    %v60 = vld [vmem:[%s2 + $0x78] sm:$0xff]
    %v61 = vld [vmem:[#allocation2] sm:$0xff]
    %v62 = vld [vmem:[#allocation2 + $0x8] sm:$0xff]
    %v63 = vld [vmem:[#allocation2 + $0x10] sm:$0xff]
    %v64 = vld [vmem:[#allocation2 + $0x18] sm:$0xff]
    %v65 = vld [vmem:[#allocation2 + $0x20] sm:$0xff]
    %v66 = vld [vmem:[#allocation2 + $0x28] sm:$0xff]
    %v67 = vld [vmem:[#allocation2 + $0x30] sm:$0xff]
    %v68 = vld [vmem:[#allocation2 + $0x38] sm:$0xff]
    %70 = vset.pattern.permute.xlu0 0
    %71 = vperm.xlu0 %70, %v29
    %v72 = vpop.permute.xlu0 %71
    %75 = vset.pattern.permute.xlu0 0
    %76 = vperm.xlu0 %75, %v30
    %v77 = vpop.permute.xlu0 %76
    %80 = vset.pattern.permute.xlu0 0
    %81 = vperm.xlu0 %80, %v31
    %v82 = vpop.permute.xlu0 %81
    %85 = vset.pattern.permute.xlu0 0
    %86 = vperm.xlu0 %85, %v32
    %v87 = vpop.permute.xlu0 %86
    %90 = vset.pattern.permute.xlu0 0
    %91 = vperm.xlu0 %90, %v33
    %v92 = vpop.permute.xlu0 %91
    %95 = vset.pattern.permute.xlu0 0
    %96 = vperm.xlu0 %95, %v34
    %v97 = vpop.permute.xlu0 %96
    %100 = vset.pattern.permute.xlu0 0
    %101 = vperm.xlu0 %100, %v35
    %v102 = vpop.permute.xlu0 %101
    %105 = vset.pattern.permute.xlu0 0
    %106 = vperm.xlu0 %105, %v36
    %v107 = vpop.permute.xlu0 %106
    %110 = vset.pattern.permute.xlu0 0
    %111 = vperm.xlu0 %110, %v37
    %v112 = vpop.permute.xlu0 %111
    %115 = vset.pattern.permute.xlu0 0
    %116 = vperm.xlu0 %115, %v38
    %v117 = vpop.permute.xlu0 %116
    %120 = vset.pattern.permute.xlu0 0
    %121 = vperm.xlu0 %120, %v39
    %v122 = vpop.permute.xlu0 %121
    %125 = vset.pattern.permute.xlu0 0
    %126 = vperm.xlu0 %125, %v40
    %v127 = vpop.permute.xlu0 %126
    %130 = vset.pattern.permute.xlu0 0
    %131 = vperm.xlu0 %130, %v41
    %v132 = vpop.permute.xlu0 %131
    %135 = vset.pattern.permute.xlu0 0
    %136 = vperm.xlu0 %135, %v42
    %v137 = vpop.permute.xlu0 %136
    %140 = vset.pattern.permute.xlu0 0
    %141 = vperm.xlu0 %140, %v43
    %v142 = vpop.permute.xlu0 %141
    %145 = vset.pattern.permute.xlu0 0
    %146 = vperm.xlu0 %145, %v44
    %v147 = vpop.permute.xlu0 %146
    %v149 = vmul.f32 %v72, %v61
    %v150 = vmul.f32 %v77, %v62
    %v151 = vmul.f32 %v82, %v63
    %v152 = vmul.f32 %v87, %v64
    %v153 = vmul.f32 %v92, %v65
    %v154 = vmul.f32 %v97, %v66
    %v155 = vmul.f32 %v102, %v67
    %v156 = vmul.f32 %v107, %v68
    %v157 = vmul.f32 %v112, %v61
    %v158 = vmul.f32 %v117, %v62
    %v159 = vmul.f32 %v122, %v63
    %v160 = vmul.f32 %v127, %v64
    %v161 = vmul.f32 %v132, %v65
    %v162 = vmul.f32 %v137, %v66
    %v163 = vmul.f32 %v142, %v67
    %v164 = vmul.f32 %v147, %v68
    %s165 = scalar_lea.vmem [#allocation2], 64
    %v166 = vld [vmem:[%s165] sm:$0xff]
    %v167 = vld [vmem:[%s165 + $0x8] sm:$0xff]
    %v168 = vld [vmem:[%s165 + $0x10] sm:$0xff]
    %v169 = vld [vmem:[%s165 + $0x18] sm:$0xff]
    %v170 = vld [vmem:[%s165 + $0x20] sm:$0xff]
    %v171 = vld [vmem:[%s165 + $0x28] sm:$0xff]
    %v172 = vld [vmem:[%s165 + $0x30] sm:$0xff]
    %v173 = vld [vmem:[%s165 + $0x38] sm:$0xff]
    %174 = vset.pattern.permute.xlu0 1
    %175 = vperm.xlu0 %174, %v29
    %v176 = vpop.permute.xlu0 %175
    %178 = vset.pattern.permute.xlu0 1
    %179 = vperm.xlu0 %178, %v30
    %v180 = vpop.permute.xlu0 %179
    %182 = vset.pattern.permute.xlu0 1
    %183 = vperm.xlu0 %182, %v31
    %v184 = vpop.permute.xlu0 %183
    %186 = vset.pattern.permute.xlu0 1
    %187 = vperm.xlu0 %186, %v32
    %v188 = vpop.permute.xlu0 %187
    %190 = vset.pattern.permute.xlu0 1
    %191 = vperm.xlu0 %190, %v33
    %v192 = vpop.permute.xlu0 %191
    %194 = vset.pattern.permute.xlu0 1
    %195 = vperm.xlu0 %194, %v34
    %v196 = vpop.permute.xlu0 %195
    %198 = vset.pattern.permute.xlu0 1
    %199 = vperm.xlu0 %198, %v35
    %v200 = vpop.permute.xlu0 %199
    %202 = vset.pattern.permute.xlu0 1
    %203 = vperm.xlu0 %202, %v36
    %v204 = vpop.permute.xlu0 %203
    %206 = vset.pattern.permute.xlu0 1
    %207 = vperm.xlu0 %206, %v37
    %v208 = vpop.permute.xlu0 %207
    %210 = vset.pattern.permute.xlu0 1
    %211 = vperm.xlu0 %210, %v38
    %v212 = vpop.permute.xlu0 %211
    %214 = vset.pattern.permute.xlu0 1
    %215 = vperm.xlu0 %214, %v39
    %v216 = vpop.permute.xlu0 %215
    %218 = vset.pattern.permute.xlu0 1
    %219 = vperm.xlu0 %218, %v40
    %v220 = vpop.permute.xlu0 %219
    %222 = vset.pattern.permute.xlu0 1
    %223 = vperm.xlu0 %222, %v41
    %v224 = vpop.permute.xlu0 %223
    %226 = vset.pattern.permute.xlu0 1
    %227 = vperm.xlu0 %226, %v42
    %v228 = vpop.permute.xlu0 %227
    %230 = vset.pattern.permute.xlu0 1
    %231 = vperm.xlu0 %230, %v43
    %v232 = vpop.permute.xlu0 %231
    %234 = vset.pattern.permute.xlu0 1
    %235 = vperm.xlu0 %234, %v44
    %v236 = vpop.permute.xlu0 %235
    %v238 = vmul.f32 %v176, %v166
    %v239 = vmul.f32 %v180, %v167
    %v240 = vmul.f32 %v184, %v168
    %v241 = vmul.f32 %v188, %v169
    %v242 = vmul.f32 %v192, %v170
    %v243 = vmul.f32 %v196, %v171
    %v244 = vmul.f32 %v200, %v172
    %v245 = vmul.f32 %v204, %v173
    %v246 = vmul.f32 %v208, %v166
    %v247 = vmul.f32 %v212, %v167
    %v248 = vmul.f32 %v216, %v168
    %v249 = vmul.f32 %v220, %v169
    %v250 = vmul.f32 %v224, %v170
    %v251 = vmul.f32 %v228, %v171
    %v252 = vmul.f32 %v232, %v172
    %v253 = vmul.f32 %v236, %v173
    %v254 = vadd.f32 %v149, %v238
    %v255 = vadd.f32 %v150, %v239
    %v256 = vadd.f32 %v151, %v240
    %v257 = vadd.f32 %v152, %v241
    %v258 = vadd.f32 %v153, %v242
    %v259 = vadd.f32 %v154, %v243
    %v260 = vadd.f32 %v155, %v244
    %v261 = vadd.f32 %v156, %v245
    %v262 = vadd.f32 %v157, %v246
    %v263 = vadd.f32 %v158, %v247
    %v264 = vadd.f32 %v159, %v248
    %v265 = vadd.f32 %v160, %v249
    %v266 = vadd.f32 %v161, %v250
    %v267 = vadd.f32 %v162, %v251
    %v268 = vadd.f32 %v163, %v252
    %v269 = vadd.f32 %v164, %v253
    %s270 = scalar_lea.vmem [#allocation2], 128
    %v271 = vld [vmem:[%s270] sm:$0xff]
    %v272 = vld [vmem:[%s270 + $0x8] sm:$0xff]
    %v273 = vld [vmem:[%s270 + $0x10] sm:$0xff]
    %v274 = vld [vmem:[%s270 + $0x18] sm:$0xff]
    %v275 = vld [vmem:[%s270 + $0x20] sm:$0xff]
    %v276 = vld [vmem:[%s270 + $0x28] sm:$0xff]
    %v277 = vld [vmem:[%s270 + $0x30] sm:$0xff]
    %v278 = vld [vmem:[%s270 + $0x38] sm:$0xff]
    %279 = vset.pattern.permute.xlu0 2
    %280 = vperm.xlu0 %279, %v29
    %v281 = vpop.permute.xlu0 %280
    %283 = vset.pattern.permute.xlu0 2
    %284 = vperm.xlu0 %283, %v30
    %v285 = vpop.permute.xlu0 %284
    %287 = vset.pattern.permute.xlu0 2
    %288 = vperm.xlu0 %287, %v31
    %v289 = vpop.permute.xlu0 %288
    %291 = vset.pattern.permute.xlu0 2
    %292 = vperm.xlu0 %291, %v32
    %v293 = vpop.permute.xlu0 %292
    %295 = vset.pattern.permute.xlu0 2
    %296 = vperm.xlu0 %295, %v33
    %v297 = vpop.permute.xlu0 %296
    %299 = vset.pattern.permute.xlu0 2
    %300 = vperm.xlu0 %299, %v34
    %v301 = vpop.permute.xlu0 %300
    %303 = vset.pattern.permute.xlu0 2
    %304 = vperm.xlu0 %303, %v35
    %v305 = vpop.permute.xlu0 %304
    %307 = vset.pattern.permute.xlu0 2
    %308 = vperm.xlu0 %307, %v36
    %v309 = vpop.permute.xlu0 %308
    %311 = vset.pattern.permute.xlu0 2
    %312 = vperm.xlu0 %311, %v37
    %v313 = vpop.permute.xlu0 %312
    %315 = vset.pattern.permute.xlu0 2
    %316 = vperm.xlu0 %315, %v38
    %v317 = vpop.permute.xlu0 %316
    %319 = vset.pattern.permute.xlu0 2
    %320 = vperm.xlu0 %319, %v39
    %v321 = vpop.permute.xlu0 %320
    %323 = vset.pattern.permute.xlu0 2
    %324 = vperm.xlu0 %323, %v40
    %v325 = vpop.permute.xlu0 %324
    %327 = vset.pattern.permute.xlu0 2
    %328 = vperm.xlu0 %327, %v41
    %v329 = vpop.permute.xlu0 %328
    %331 = vset.pattern.permute.xlu0 2
    %332 = vperm.xlu0 %331, %v42
    %v333 = vpop.permute.xlu0 %332
    %335 = vset.pattern.permute.xlu0 2
    %336 = vperm.xlu0 %335, %v43
    %v337 = vpop.permute.xlu0 %336
    %339 = vset.pattern.permute.xlu0 2
    %340 = vperm.xlu0 %339, %v44
    %v341 = vpop.permute.xlu0 %340
    %v343 = vmul.f32 %v281, %v271
    %v344 = vmul.f32 %v285, %v272
    %v345 = vmul.f32 %v289, %v273
    %v346 = vmul.f32 %v293, %v274
    %v347 = vmul.f32 %v297, %v275
    %v348 = vmul.f32 %v301, %v276
    %v349 = vmul.f32 %v305, %v277
    %v350 = vmul.f32 %v309, %v278
    %v351 = vmul.f32 %v313, %v271
    %v352 = vmul.f32 %v317, %v272
    %v353 = vmul.f32 %v321, %v273
    %v354 = vmul.f32 %v325, %v274
    %v355 = vmul.f32 %v329, %v275
    %v356 = vmul.f32 %v333, %v276
    %v357 = vmul.f32 %v337, %v277
    %v358 = vmul.f32 %v341, %v278
    %v359 = vadd.f32 %v254, %v343
    %v360 = vadd.f32 %v255, %v344
    %v361 = vadd.f32 %v256, %v345
    %v362 = vadd.f32 %v257, %v346
    %v363 = vadd.f32 %v258, %v347
    %v364 = vadd.f32 %v259, %v348
    %v365 = vadd.f32 %v260, %v349
    %v366 = vadd.f32 %v261, %v350
    %v367 = vadd.f32 %v262, %v351
    %v368 = vadd.f32 %v263, %v352
    %v369 = vadd.f32 %v264, %v353
    %v370 = vadd.f32 %v265, %v354
    %v371 = vadd.f32 %v266, %v355
    %v372 = vadd.f32 %v267, %v356
    %v373 = vadd.f32 %v268, %v357
    %v374 = vadd.f32 %v269, %v358
    %s375 = scalar_lea.vmem [#allocation2], 192
    %v376 = vld [vmem:[%s375] sm:$0xff]
    %v377 = vld [vmem:[%s375 + $0x8] sm:$0xff]
    %v378 = vld [vmem:[%s375 + $0x10] sm:$0xff]
    %v379 = vld [vmem:[%s375 + $0x18] sm:$0xff]
    %v380 = vld [vmem:[%s375 + $0x20] sm:$0xff]
    %v381 = vld [vmem:[%s375 + $0x28] sm:$0xff]
    %v382 = vld [vmem:[%s375 + $0x30] sm:$0xff]
    %v383 = vld [vmem:[%s375 + $0x38] sm:$0xff]
    %384 = vset.pattern.permute.xlu0 3
    %385 = vperm.xlu0 %384, %v29
    %v386 = vpop.permute.xlu0 %385
    %388 = vset.pattern.permute.xlu0 3
    %389 = vperm.xlu0 %388, %v30
    %v390 = vpop.permute.xlu0 %389
    %392 = vset.pattern.permute.xlu0 3
    %393 = vperm.xlu0 %392, %v31
    %v394 = vpop.permute.xlu0 %393
    %396 = vset.pattern.permute.xlu0 3
    %397 = vperm.xlu0 %396, %v32
    %v398 = vpop.permute.xlu0 %397
    %400 = vset.pattern.permute.xlu0 3
    %401 = vperm.xlu0 %400, %v33
    %v402 = vpop.permute.xlu0 %401
    %404 = vset.pattern.permute.xlu0 3
    %405 = vperm.xlu0 %404, %v34
    %v406 = vpop.permute.xlu0 %405
    %408 = vset.pattern.permute.xlu0 3
    %409 = vperm.xlu0 %408, %v35
    %v410 = vpop.permute.xlu0 %409
    %412 = vset.pattern.permute.xlu0 3
    %413 = vperm.xlu0 %412, %v36
    %v414 = vpop.permute.xlu0 %413
    %416 = vset.pattern.permute.xlu0 3
    %417 = vperm.xlu0 %416, %v37
    %v418 = vpop.permute.xlu0 %417
    %420 = vset.pattern.permute.xlu0 3
    %421 = vperm.xlu0 %420, %v38
    %v422 = vpop.permute.xlu0 %421
    %424 = vset.pattern.permute.xlu0 3
    %425 = vperm.xlu0 %424, %v39
    %v426 = vpop.permute.xlu0 %425
    %428 = vset.pattern.permute.xlu0 3
    %429 = vperm.xlu0 %428, %v40
    %v430 = vpop.permute.xlu0 %429
    %432 = vset.pattern.permute.xlu0 3
    %433 = vperm.xlu0 %432, %v41
    %v434 = vpop.permute.xlu0 %433
    %436 = vset.pattern.permute.xlu0 3
    %437 = vperm.xlu0 %436, %v42
    %v438 = vpop.permute.xlu0 %437
    %440 = vset.pattern.permute.xlu0 3
    %441 = vperm.xlu0 %440, %v43
    %v442 = vpop.permute.xlu0 %441
    %444 = vset.pattern.permute.xlu0 3
    %445 = vperm.xlu0 %444, %v44
    %v446 = vpop.permute.xlu0 %445
    %v448 = vmul.f32 %v386, %v376
    %v449 = vmul.f32 %v390, %v377
    %v450 = vmul.f32 %v394, %v378
    %v451 = vmul.f32 %v398, %v379
    %v452 = vmul.f32 %v402, %v380
    %v453 = vmul.f32 %v406, %v381
    %v454 = vmul.f32 %v410, %v382
    %v455 = vmul.f32 %v414, %v383
    %v456 = vmul.f32 %v418, %v376
    %v457 = vmul.f32 %v422, %v377
    %v458 = vmul.f32 %v426, %v378
    %v459 = vmul.f32 %v430, %v379
    %v460 = vmul.f32 %v434, %v380
    %v461 = vmul.f32 %v438, %v381
    %v462 = vmul.f32 %v442, %v382
    %v463 = vmul.f32 %v446, %v383
    %v464 = vadd.f32 %v359, %v448
    %v465 = vadd.f32 %v360, %v449
    %v466 = vadd.f32 %v361, %v450
    %v467 = vadd.f32 %v362, %v451
    %v468 = vadd.f32 %v363, %v452
    %v469 = vadd.f32 %v364, %v453
    %v470 = vadd.f32 %v365, %v454
    %v471 = vadd.f32 %v366, %v455
    %v472 = vadd.f32 %v367, %v456
    %v473 = vadd.f32 %v368, %v457
    %v474 = vadd.f32 %v369, %v458
    %v475 = vadd.f32 %v370, %v459
    %v476 = vadd.f32 %v371, %v460
    %v477 = vadd.f32 %v372, %v461
    %v478 = vadd.f32 %v373, %v462
    %v479 = vadd.f32 %v374, %v463
    %s480 = scalar_lea.vmem [#allocation2], 256
    %v481 = vld [vmem:[%s480] sm:$0xff]
    %v482 = vld [vmem:[%s480 + $0x8] sm:$0xff]
    %v483 = vld [vmem:[%s480 + $0x10] sm:$0xff]
    %v484 = vld [vmem:[%s480 + $0x18] sm:$0xff]
    %v485 = vld [vmem:[%s480 + $0x20] sm:$0xff]
    %v486 = vld [vmem:[%s480 + $0x28] sm:$0xff]
    %v487 = vld [vmem:[%s480 + $0x30] sm:$0xff]
    %v488 = vld [vmem:[%s480 + $0x38] sm:$0xff]
    %489 = vset.pattern.permute.xlu0 4
    %490 = vperm.xlu0 %489, %v29
    %v491 = vpop.permute.xlu0 %490
    %493 = vset.pattern.permute.xlu0 4
    %494 = vperm.xlu0 %493, %v30
    %v495 = vpop.permute.xlu0 %494
    %497 = vset.pattern.permute.xlu0 4
    %498 = vperm.xlu0 %497, %v31
    %v499 = vpop.permute.xlu0 %498
    %501 = vset.pattern.permute.xlu0 4
    %502 = vperm.xlu0 %501, %v32
    %v503 = vpop.permute.xlu0 %502
    %505 = vset.pattern.permute.xlu0 4
    %506 = vperm.xlu0 %505, %v33
    %v507 = vpop.permute.xlu0 %506
    %509 = vset.pattern.permute.xlu0 4
    %510 = vperm.xlu0 %509, %v34
    %v511 = vpop.permute.xlu0 %510
    %513 = vset.pattern.permute.xlu0 4
    %514 = vperm.xlu0 %513, %v35
    %v515 = vpop.permute.xlu0 %514
    %517 = vset.pattern.permute.xlu0 4
    %518 = vperm.xlu0 %517, %v36
    %v519 = vpop.permute.xlu0 %518
    %521 = vset.pattern.permute.xlu0 4
    %522 = vperm.xlu0 %521, %v37
    %v523 = vpop.permute.xlu0 %522
    %525 = vset.pattern.permute.xlu0 4
    %526 = vperm.xlu0 %525, %v38
    %v527 = vpop.permute.xlu0 %526
    %529 = vset.pattern.permute.xlu0 4
    %530 = vperm.xlu0 %529, %v39
    %v531 = vpop.permute.xlu0 %530
    %533 = vset.pattern.permute.xlu0 4
    %534 = vperm.xlu0 %533, %v40
    %v535 = vpop.permute.xlu0 %534
    %537 = vset.pattern.permute.xlu0 4
    %538 = vperm.xlu0 %537, %v41
    %v539 = vpop.permute.xlu0 %538
    %541 = vset.pattern.permute.xlu0 4
    %542 = vperm.xlu0 %541, %v42
    %v543 = vpop.permute.xlu0 %542
    %545 = vset.pattern.permute.xlu0 4
    %546 = vperm.xlu0 %545, %v43
    %v547 = vpop.permute.xlu0 %546
    %549 = vset.pattern.permute.xlu0 4
    %550 = vperm.xlu0 %549, %v44
    %v551 = vpop.permute.xlu0 %550
    %v553 = vmul.f32 %v491, %v481
    %v554 = vmul.f32 %v495, %v482
    %v555 = vmul.f32 %v499, %v483
    %v556 = vmul.f32 %v503, %v484
    %v557 = vmul.f32 %v507, %v485
    %v558 = vmul.f32 %v511, %v486
    %v559 = vmul.f32 %v515, %v487
    %v560 = vmul.f32 %v519, %v488
    %v561 = vmul.f32 %v523, %v481
    %v562 = vmul.f32 %v527, %v482
    %v563 = vmul.f32 %v531, %v483
    %v564 = vmul.f32 %v535, %v484
    %v565 = vmul.f32 %v539, %v485
    %v566 = vmul.f32 %v543, %v486
    %v567 = vmul.f32 %v547, %v487
    %v568 = vmul.f32 %v551, %v488
    %v569 = vadd.f32 %v464, %v553
    %v570 = vadd.f32 %v465, %v554
    %v571 = vadd.f32 %v466, %v555
    %v572 = vadd.f32 %v467, %v556
    %v573 = vadd.f32 %v468, %v557
    %v574 = vadd.f32 %v469, %v558
    %v575 = vadd.f32 %v470, %v559
    %v576 = vadd.f32 %v471, %v560
    %v577 = vadd.f32 %v472, %v561
    %v578 = vadd.f32 %v473, %v562
    %v579 = vadd.f32 %v474, %v563
    %v580 = vadd.f32 %v475, %v564
    %v581 = vadd.f32 %v476, %v565
    %v582 = vadd.f32 %v477, %v566
    %v583 = vadd.f32 %v478, %v567
    %v584 = vadd.f32 %v479, %v568
    %s585 = scalar_lea.vmem [#allocation2], 320
    %v586 = vld [vmem:[%s585] sm:$0xff]
    %v587 = vld [vmem:[%s585 + $0x8] sm:$0xff]
    %v588 = vld [vmem:[%s585 + $0x10] sm:$0xff]
    %v589 = vld [vmem:[%s585 + $0x18] sm:$0xff]
    %v590 = vld [vmem:[%s585 + $0x20] sm:$0xff]
    %v591 = vld [vmem:[%s585 + $0x28] sm:$0xff]
    %v592 = vld [vmem:[%s585 + $0x30] sm:$0xff]
    %v593 = vld [vmem:[%s585 + $0x38] sm:$0xff]
    %594 = vset.pattern.permute.xlu0 5
    %595 = vperm.xlu0 %594, %v29
    %v596 = vpop.permute.xlu0 %595
    %598 = vset.pattern.permute.xlu0 5
    %599 = vperm.xlu0 %598, %v30
    %v600 = vpop.permute.xlu0 %599
    %602 = vset.pattern.permute.xlu0 5
    %603 = vperm.xlu0 %602, %v31
    %v604 = vpop.permute.xlu0 %603
    %606 = vset.pattern.permute.xlu0 5
    %607 = vperm.xlu0 %606, %v32
    %v608 = vpop.permute.xlu0 %607
    %610 = vset.pattern.permute.xlu0 5
    %611 = vperm.xlu0 %610, %v33
    %v612 = vpop.permute.xlu0 %611
    %614 = vset.pattern.permute.xlu0 5
    %615 = vperm.xlu0 %614, %v34
    %v616 = vpop.permute.xlu0 %615
    %618 = vset.pattern.permute.xlu0 5
    %619 = vperm.xlu0 %618, %v35
    %v620 = vpop.permute.xlu0 %619
    %622 = vset.pattern.permute.xlu0 5
    %623 = vperm.xlu0 %622, %v36
    %v624 = vpop.permute.xlu0 %623
    %626 = vset.pattern.permute.xlu0 5
    %627 = vperm.xlu0 %626, %v37
    %v628 = vpop.permute.xlu0 %627
    %630 = vset.pattern.permute.xlu0 5
    %631 = vperm.xlu0 %630, %v38
    %v632 = vpop.permute.xlu0 %631
    %634 = vset.pattern.permute.xlu0 5
    %635 = vperm.xlu0 %634, %v39
    %v636 = vpop.permute.xlu0 %635
    %638 = vset.pattern.permute.xlu0 5
    %639 = vperm.xlu0 %638, %v40
    %v640 = vpop.permute.xlu0 %639
    %642 = vset.pattern.permute.xlu0 5
    %643 = vperm.xlu0 %642, %v41
    %v644 = vpop.permute.xlu0 %643
    %646 = vset.pattern.permute.xlu0 5
    %647 = vperm.xlu0 %646, %v42
    %v648 = vpop.permute.xlu0 %647
    %650 = vset.pattern.permute.xlu0 5
    %651 = vperm.xlu0 %650, %v43
    %v652 = vpop.permute.xlu0 %651
    %654 = vset.pattern.permute.xlu0 5
    %655 = vperm.xlu0 %654, %v44
    %v656 = vpop.permute.xlu0 %655
    %v658 = vmul.f32 %v596, %v586
    %v659 = vmul.f32 %v600, %v587
    %v660 = vmul.f32 %v604, %v588
    %v661 = vmul.f32 %v608, %v589
    %v662 = vmul.f32 %v612, %v590
    %v663 = vmul.f32 %v616, %v591
    %v664 = vmul.f32 %v620, %v592
    %v665 = vmul.f32 %v624, %v593
    %v666 = vmul.f32 %v628, %v586
    %v667 = vmul.f32 %v632, %v587
    %v668 = vmul.f32 %v636, %v588
    %v669 = vmul.f32 %v640, %v589
    %v670 = vmul.f32 %v644, %v590
    %v671 = vmul.f32 %v648, %v591
    %v672 = vmul.f32 %v652, %v592
    %v673 = vmul.f32 %v656, %v593
    %v674 = vadd.f32 %v569, %v658
    %v675 = vadd.f32 %v570, %v659
    %v676 = vadd.f32 %v571, %v660
    %v677 = vadd.f32 %v572, %v661
    %v678 = vadd.f32 %v573, %v662
    %v679 = vadd.f32 %v574, %v663
    %v680 = vadd.f32 %v575, %v664
    %v681 = vadd.f32 %v576, %v665
    %v682 = vadd.f32 %v577, %v666
    %v683 = vadd.f32 %v578, %v667
    %v684 = vadd.f32 %v579, %v668
    %v685 = vadd.f32 %v580, %v669
    %v686 = vadd.f32 %v581, %v670
    %v687 = vadd.f32 %v582, %v671
    %v688 = vadd.f32 %v583, %v672
    %v689 = vadd.f32 %v584, %v673
    %s690 = scalar_lea.vmem [#allocation2], 384
    %v691 = vld [vmem:[%s690] sm:$0xff]
    %v692 = vld [vmem:[%s690 + $0x8] sm:$0xff]
    %v693 = vld [vmem:[%s690 + $0x10] sm:$0xff]
    %v694 = vld [vmem:[%s690 + $0x18] sm:$0xff]
    %v695 = vld [vmem:[%s690 + $0x20] sm:$0xff]
    %v696 = vld [vmem:[%s690 + $0x28] sm:$0xff]
    %v697 = vld [vmem:[%s690 + $0x30] sm:$0xff]
    %v698 = vld [vmem:[%s690 + $0x38] sm:$0xff]
    %699 = vset.pattern.permute.xlu0 6
    %700 = vperm.xlu0 %699, %v29
    %v701 = vpop.permute.xlu0 %700
    %703 = vset.pattern.permute.xlu0 6
    %704 = vperm.xlu0 %703, %v30
    %v705 = vpop.permute.xlu0 %704
    %707 = vset.pattern.permute.xlu0 6
    %708 = vperm.xlu0 %707, %v31
    %v709 = vpop.permute.xlu0 %708
    %711 = vset.pattern.permute.xlu0 6
    %712 = vperm.xlu0 %711, %v32
    %v713 = vpop.permute.xlu0 %712
    %715 = vset.pattern.permute.xlu0 6
    %716 = vperm.xlu0 %715, %v33
    %v717 = vpop.permute.xlu0 %716
    %719 = vset.pattern.permute.xlu0 6
    %720 = vperm.xlu0 %719, %v34
    %v721 = vpop.permute.xlu0 %720
    %723 = vset.pattern.permute.xlu0 6
    %724 = vperm.xlu0 %723, %v35
    %v725 = vpop.permute.xlu0 %724
    %727 = vset.pattern.permute.xlu0 6
    %728 = vperm.xlu0 %727, %v36
    %v729 = vpop.permute.xlu0 %728
    %731 = vset.pattern.permute.xlu0 6
    %732 = vperm.xlu0 %731, %v37
    %v733 = vpop.permute.xlu0 %732
    %735 = vset.pattern.permute.xlu0 6
    %736 = vperm.xlu0 %735, %v38
    %v737 = vpop.permute.xlu0 %736
    %739 = vset.pattern.permute.xlu0 6
    %740 = vperm.xlu0 %739, %v39
    %v741 = vpop.permute.xlu0 %740
    %743 = vset.pattern.permute.xlu0 6
    %744 = vperm.xlu0 %743, %v40
    %v745 = vpop.permute.xlu0 %744
    %747 = vset.pattern.permute.xlu0 6
    %748 = vperm.xlu0 %747, %v41
    %v749 = vpop.permute.xlu0 %748
    %751 = vset.pattern.permute.xlu0 6
    %752 = vperm.xlu0 %751, %v42
    %v753 = vpop.permute.xlu0 %752
    %755 = vset.pattern.permute.xlu0 6
    %756 = vperm.xlu0 %755, %v43
    %v757 = vpop.permute.xlu0 %756
    %759 = vset.pattern.permute.xlu0 6
    %760 = vperm.xlu0 %759, %v44
    %v761 = vpop.permute.xlu0 %760
    %v763 = vmul.f32 %v701, %v691
    %v764 = vmul.f32 %v705, %v692
    %v765 = vmul.f32 %v709, %v693
    %v766 = vmul.f32 %v713, %v694
    %v767 = vmul.f32 %v717, %v695
    %v768 = vmul.f32 %v721, %v696
    %v769 = vmul.f32 %v725, %v697
    %v770 = vmul.f32 %v729, %v698
    %v771 = vmul.f32 %v733, %v691
    %v772 = vmul.f32 %v737, %v692
    %v773 = vmul.f32 %v741, %v693
    %v774 = vmul.f32 %v745, %v694
    %v775 = vmul.f32 %v749, %v695
    %v776 = vmul.f32 %v753, %v696
    %v777 = vmul.f32 %v757, %v697
    %v778 = vmul.f32 %v761, %v698
    %v779 = vadd.f32 %v674, %v763
    %v780 = vadd.f32 %v675, %v764
    %v781 = vadd.f32 %v676, %v765
    %v782 = vadd.f32 %v677, %v766
    %v783 = vadd.f32 %v678, %v767
    %v784 = vadd.f32 %v679, %v768
    %v785 = vadd.f32 %v680, %v769
    %v786 = vadd.f32 %v681, %v770
    %v787 = vadd.f32 %v682, %v771
    %v788 = vadd.f32 %v683, %v772
    %v789 = vadd.f32 %v684, %v773
    %v790 = vadd.f32 %v685, %v774
    %v791 = vadd.f32 %v686, %v775
    %v792 = vadd.f32 %v687, %v776
    %v793 = vadd.f32 %v688, %v777
    %v794 = vadd.f32 %v689, %v778
    %s795 = scalar_lea.vmem [#allocation2], 448
    %v796 = vld [vmem:[%s795] sm:$0xff]
    %v797 = vld [vmem:[%s795 + $0x8] sm:$0xff]
    %v798 = vld [vmem:[%s795 + $0x10] sm:$0xff]
    %v799 = vld [vmem:[%s795 + $0x18] sm:$0xff]
    %v800 = vld [vmem:[%s795 + $0x20] sm:$0xff]
    %v801 = vld [vmem:[%s795 + $0x28] sm:$0xff]
    %v802 = vld [vmem:[%s795 + $0x30] sm:$0xff]
    %v803 = vld [vmem:[%s795 + $0x38] sm:$0xff]
    %804 = vset.pattern.permute.xlu0 7
    %805 = vperm.xlu0 %804, %v29
    %v806 = vpop.permute.xlu0 %805
    %808 = vset.pattern.permute.xlu0 7
    %809 = vperm.xlu0 %808, %v30
    %v810 = vpop.permute.xlu0 %809
    %812 = vset.pattern.permute.xlu0 7
    %813 = vperm.xlu0 %812, %v31
    %v814 = vpop.permute.xlu0 %813
    %816 = vset.pattern.permute.xlu0 7
    %817 = vperm.xlu0 %816, %v32
    %v818 = vpop.permute.xlu0 %817
    %820 = vset.pattern.permute.xlu0 7
    %821 = vperm.xlu0 %820, %v33
    %v822 = vpop.permute.xlu0 %821
    %824 = vset.pattern.permute.xlu0 7
    %825 = vperm.xlu0 %824, %v34
    %v826 = vpop.permute.xlu0 %825
    %828 = vset.pattern.permute.xlu0 7
    %829 = vperm.xlu0 %828, %v35
    %v830 = vpop.permute.xlu0 %829
    %832 = vset.pattern.permute.xlu0 7
    %833 = vperm.xlu0 %832, %v36
    %v834 = vpop.permute.xlu0 %833
    %836 = vset.pattern.permute.xlu0 7
    %837 = vperm.xlu0 %836, %v37
    %v838 = vpop.permute.xlu0 %837
    %840 = vset.pattern.permute.xlu0 7
    %841 = vperm.xlu0 %840, %v38
    %v842 = vpop.permute.xlu0 %841
    %844 = vset.pattern.permute.xlu0 7
    %845 = vperm.xlu0 %844, %v39
    %v846 = vpop.permute.xlu0 %845
    %848 = vset.pattern.permute.xlu0 7
    %849 = vperm.xlu0 %848, %v40
    %v850 = vpop.permute.xlu0 %849
    %852 = vset.pattern.permute.xlu0 7
    %853 = vperm.xlu0 %852, %v41
    %v854 = vpop.permute.xlu0 %853
    %856 = vset.pattern.permute.xlu0 7
    %857 = vperm.xlu0 %856, %v42
    %v858 = vpop.permute.xlu0 %857
    %860 = vset.pattern.permute.xlu0 7
    %861 = vperm.xlu0 %860, %v43
    %v862 = vpop.permute.xlu0 %861
    %864 = vset.pattern.permute.xlu0 7
    %865 = vperm.xlu0 %864, %v44
    %v866 = vpop.permute.xlu0 %865
    %v868 = vmul.f32 %v806, %v796
    %v869 = vmul.f32 %v810, %v797
    %v870 = vmul.f32 %v814, %v798
    %v871 = vmul.f32 %v818, %v799
    %v872 = vmul.f32 %v822, %v800
    %v873 = vmul.f32 %v826, %v801
    %v874 = vmul.f32 %v830, %v802
    %v875 = vmul.f32 %v834, %v803
    %v876 = vmul.f32 %v838, %v796
    %v877 = vmul.f32 %v842, %v797
    %v878 = vmul.f32 %v846, %v798
    %v879 = vmul.f32 %v850, %v799
    %v880 = vmul.f32 %v854, %v800
    %v881 = vmul.f32 %v858, %v801
    %v882 = vmul.f32 %v862, %v802
    %v883 = vmul.f32 %v866, %v803
    %v884 = vadd.f32 %v779, %v868
    %v885 = vadd.f32 %v780, %v869
    %v886 = vadd.f32 %v781, %v870
    %v887 = vadd.f32 %v782, %v871
    %v888 = vadd.f32 %v783, %v872
    %v889 = vadd.f32 %v784, %v873
    %v890 = vadd.f32 %v785, %v874
    %v891 = vadd.f32 %v786, %v875
    %v892 = vadd.f32 %v787, %v876
    %v893 = vadd.f32 %v788, %v877
    %v894 = vadd.f32 %v789, %v878
    %v895 = vadd.f32 %v790, %v879
    %v896 = vadd.f32 %v791, %v880
    %v897 = vadd.f32 %v792, %v881
    %v898 = vadd.f32 %v793, %v882
    %v899 = vadd.f32 %v794, %v883
    %v900 = vadd.f32 %v884, %v885
    %v901 = vadd.f32 %v900, %v886
    %v902 = vadd.f32 %v901, %v887
    %v903 = vadd.f32 %v902, %v888
    %v904 = vadd.f32 %v903, %v889
    %v905 = vadd.f32 %v904, %v890
    %v906 = vadd.f32 %v905, %v891
    %v907 = vrot.slane %v906, 4
    %v908 = vadd.f32 %v906, %v907
    %v909 = vrot.slane %v908, 2
    %v910 = vadd.f32 %v908, %v909
    %v911 = vrot.slane %v910, 1
    %v912 = vadd.f32 %v910, %v911
    %v913 = vadd.f32 %v892, %v893
    %v914 = vadd.f32 %v913, %v894
    %v915 = vadd.f32 %v914, %v895
    %v916 = vadd.f32 %v915, %v896
    %v917 = vadd.f32 %v916, %v897
    %v918 = vadd.f32 %v917, %v898
    %v919 = vadd.f32 %v918, %v899
    %v920 = vrot.slane %v919, 4
    %v921 = vadd.f32 %v919, %v920
    %v922 = vrot.slane %v921, 2
    %v923 = vadd.f32 %v921, %v922
    %v924 = vrot.slane %v923, 1
    %v925 = vadd.f32 %v923, %v924
    %v926 = vmul.f32 %v912, 0.015625
    %v927 = vmul.f32 %v925, 0.015625
    %v928 = vmul.f32 %v926, %v926
    %v929 = vmul.f32 %v927, %v927
    %vm932 = vcmask 1041409
    %v933 = vsel %vm932, %v929, %v928
    %935 = vmatprep.subr.mxu0 0.0
    %936 = vmatpush1.msra.mxu0 %v45
    %937 = vmatprep.subr.mxu0 0.0
    %938 = vmatpush1.msra.mxu0 %v46
    %939 = vmatprep.subr.mxu0 0.0
    %940 = vmatpush1.msra.mxu0 %v47
    %941 = vmatprep.subr.mxu0 0.0
    %942 = vmatpush1.msra.mxu0 %v48
    %943 = vmatprep.subr.mxu0 0.0
    %944 = vmatpush1.msra.mxu0 %v49
    %945 = vmatprep.subr.mxu0 0.0
    %946 = vmatpush1.msra.mxu0 %v50
    %947 = vmatprep.subr.mxu0 0.0
    %948 = vmatpush1.msra.mxu0 %v51
    %949 = vmatprep.subr.mxu0 0.0
    %950 = vmatpush1.msra.mxu0 %v52
    %951 = vmatprep.subr.mxu0 0.0
    %952 = vmatpush1.msra.mxu0 %v53
    %953 = vmatprep.subr.mxu0 0.0
    %954 = vmatpush1.msra.mxu0 %v54
    %955 = vmatprep.subr.mxu0 0.0
    %956 = vmatpush1.msra.mxu0 %v55
    %957 = vmatprep.subr.mxu0 0.0
    %958 = vmatpush1.msra.mxu0 %v56
    %959 = vmatprep.subr.mxu0 0.0
    %960 = vmatpush1.msra.mxu0 %v57
    %961 = vmatprep.subr.mxu0 0.0
    %962 = vmatpush1.msra.mxu0 %v58
    %963 = vmatprep.subr.mxu0 0.0
    %964 = vmatpush1.msra.mxu0 %v59
    %965 = vmatprep.subr.mxu0 0.0
    %966 = vmatpush1.msra.mxu0 %v60
    %967 = vmatprep.subr.mxu0 0.0
    %968 = vmatpush1.msra.mxu0 0.0
    %969 = vmatprep.subr.mxu0 0.0
    %970 = vmatpush1.msra.mxu0 0.0
    %971 = vmatprep.subr.mxu0 0.0
    %972 = vmatpush1.msra.mxu0 0.0
    %973 = vmatprep.subr.mxu0 0.0
    %974 = vmatpush1.msra.mxu0 0.0
    %975 = vmatprep.subr.mxu0 0.0
    %976 = vmatpush1.msra.mxu0 0.0
    %977 = vmatprep.subr.mxu0 0.0
    %978 = vmatpush1.msra.mxu0 0.0
    %979 = vmatprep.subr.mxu0 0.0
    %980 = vmatpush1.msra.mxu0 0.0
    %981 = vmatprep.subr.mxu0 0.0
    %982 = vmatpush1.msra.mxu0 0.0
    %983 = vmatprep.subr.mxu0 0.0
    %984 = vmatpush1.msra.mxu0 0.0
    %985 = vmatprep.subr.mxu0 0.0
    %986 = vmatpush1.msra.mxu0 0.0
    %987 = vmatprep.subr.mxu0 0.0
    %988 = vmatpush1.msra.mxu0 0.0
    %989 = vmatprep.subr.mxu0 0.0
    %990 = vmatpush1.msra.mxu0 0.0
    %991 = vmatprep.subr.mxu0 0.0
    %992 = vmatpush1.msra.mxu0 0.0
    %993 = vmatprep.subr.mxu0 0.0
    %994 = vmatpush1.msra.mxu0 0.0
    %995 = vmatprep.subr.mxu0 0.0
    %996 = vmatpush1.msra.mxu0 0.0
    %997 = vmatprep.subr.mxu0 0.0
    %998 = vmatpush1.msra.mxu0 0.0
    %999 = vmatprep.mubr.f32.mxu0 0.0
    %1000 = vmatmul.mubr.f32.gmra.mrb[0].mxu0 %v933
    %v1001 = vpop.f32.mrb[0].mxu0
    %v1002 = vadd.f32 0.0, %v1001
    %v1003 = vpop.f32.mrb[0].mxu0
    %1004 = vdwg.mxu0
    %v1005 = vrsqrt.pop %v1002
    %v1006 = vmul.f32 %v1002, %v1005
    %vm1007 = vcmp.eq.f32.partialorder %v1002, inf
    %v1008 = vsel %vm1007, %v1002, %v1006
    %vm1009 = vcmp.eq.f32.partialorder %v1002, 0.0
    %v1010 = vand.u32 %v1002, 2147483648
    %v1011 = vsel %vm1009, %v1010, %v1008
    %v1013 = vrot.slane %v1011, 1
    %v1016 = vmul.f32 %v926, %v1011
    %v1017 = vmul.f32 %v927, %v1013
    %v1018 = vadd.f32 %v1002, 1.0
    %v1020 = vrot.slane %v1018, 1
    %v1023 = vrcp.pop %v1018
    %v1024 = vmul.f32 %v1016, %v1023
    %v1025 = vrcp.pop %v1020
    %v1026 = vmul.f32 %v1017, %v1025
    %v1027 = vlaneseq
    %v1028 = vshrl.u32 %v1027, 7
    %v1029 = vsub.s32 0, %v1028
    %v1030 = vrot.slane %v1024, %v1029
    %v1031 = vlaneseq
    %v1032 = vshrl.u32 %v1031, 7
    %v1033 = vsub.s32 0, %v1032
    %v1034 = vrot.slane %v1026, %v1033
    %v1035 = vmul.f32 %v884, %v1030
    %v1036 = vmul.f32 %v885, %v1030
    %v1037 = vmul.f32 %v886, %v1030
    %v1038 = vmul.f32 %v887, %v1030
    %v1039 = vmul.f32 %v888, %v1030
    %v1040 = vmul.f32 %v889, %v1030
    %v1041 = vmul.f32 %v890, %v1030
    %v1042 = vmul.f32 %v891, %v1030
    %v1043 = vmul.f32 %v892, %v1034
    %v1044 = vmul.f32 %v893, %v1034
    %v1045 = vmul.f32 %v894, %v1034
    %v1046 = vmul.f32 %v895, %v1034
    %v1047 = vmul.f32 %v896, %v1034
    %v1048 = vmul.f32 %v897, %v1034
    %v1049 = vmul.f32 %v898, %v1034
    %v1050 = vmul.f32 %v899, %v1034
    %1051 = vmatprep.subr.mxu0 0.0
    %1052 = vmatpush1.msra.mxu0 %v45
    %1053 = vmatprep.subr.mxu0 0.0
    %1054 = vmatpush1.msra.mxu0 %v46
    %1055 = vmatprep.subr.mxu0 0.0
    %1056 = vmatpush1.msra.mxu0 %v47
    %1057 = vmatprep.subr.mxu0 0.0
    %1058 = vmatpush1.msra.mxu0 %v48
    %1059 = vmatprep.subr.mxu0 0.0
    %1060 = vmatpush1.msra.mxu0 %v49
    %1061 = vmatprep.subr.mxu0 0.0
    %1062 = vmatpush1.msra.mxu0 %v50
    %1063 = vmatprep.subr.mxu0 0.0
    %1064 = vmatpush1.msra.mxu0 %v51
    %1065 = vmatprep.subr.mxu0 0.0
    %1066 = vmatpush1.msra.mxu0 %v52
    %1067 = vmatprep.subr.mxu0 0.0
    %1068 = vmatpush1.msra.mxu0 %v53
    %1069 = vmatprep.subr.mxu0 0.0
    %1070 = vmatpush1.msra.mxu0 %v54
    %1071 = vmatprep.subr.mxu0 0.0
    %1072 = vmatpush1.msra.mxu0 %v55
    %1073 = vmatprep.subr.mxu0 0.0
    %1074 = vmatpush1.msra.mxu0 %v56
    %1075 = vmatprep.subr.mxu0 0.0
    %1076 = vmatpush1.msra.mxu0 %v57
    %1077 = vmatprep.subr.mxu0 0.0
    %1078 = vmatpush1.msra.mxu0 %v58
    %1079 = vmatprep.subr.mxu0 0.0
    %1080 = vmatpush1.msra.mxu0 %v59
    %1081 = vmatprep.subr.mxu0 0.0
    %1082 = vmatpush1.msra.mxu0 %v60
    %1083 = vmatprep.subr.mxu0 0.0
    %1084 = vmatpush1.msra.mxu0 0.0
    %1085 = vmatprep.subr.mxu0 0.0
    %1086 = vmatpush1.msra.mxu0 0.0
    %1087 = vmatprep.subr.mxu0 0.0
    %1088 = vmatpush1.msra.mxu0 0.0
    %1089 = vmatprep.subr.mxu0 0.0
    %1090 = vmatpush1.msra.mxu0 0.0
    %1091 = vmatprep.subr.mxu0 0.0
    %1092 = vmatpush1.msra.mxu0 0.0
    %1093 = vmatprep.subr.mxu0 0.0
    %1094 = vmatpush1.msra.mxu0 0.0
    %1095 = vmatprep.subr.mxu0 0.0
    %1096 = vmatpush1.msra.mxu0 0.0
    %1097 = vmatprep.subr.mxu0 0.0
    %1098 = vmatpush1.msra.mxu0 0.0
    %1099 = vmatprep.subr.mxu0 0.0
    %1100 = vmatpush1.msra.mxu0 0.0
    %1101 = vmatprep.subr.mxu0 0.0
    %1102 = vmatpush1.msra.mxu0 0.0
    %1103 = vmatprep.subr.mxu0 0.0
    %1104 = vmatpush1.msra.mxu0 0.0
    %1105 = vmatprep.subr.mxu0 0.0
    %1106 = vmatpush1.msra.mxu0 0.0
    %1107 = vmatprep.subr.mxu0 0.0
    %1108 = vmatpush1.msra.mxu0 0.0
    %1109 = vmatprep.subr.mxu0 0.0
    %1110 = vmatpush1.msra.mxu0 0.0
    %1111 = vmatprep.subr.mxu0 0.0
    %1112 = vmatpush1.msra.mxu0 0.0
    %1113 = vmatprep.subr.mxu0 0.0
    %1114 = vmatpush1.msra.mxu0 0.0
    %1115 = vmatprep.mubr.f32.mxu0 0.0
    %1116 = vmatmul.mubr.f32.gmra.mrb[0].mxu0 %v1035
    %v1117 = vpop.f32.mrb[0].mxu0
    %v1118 = vadd.f32 0.0, %v1117
    %v1119 = vpop.f32.mrb[0].mxu0
    %1120 = vmatprep.mubr.f32.mxu0 0.0
    %1121 = vmatmul.mubr.f32.gmra.mrb[0].mxu0 %v1036
    %v1122 = vpop.f32.mrb[0].mxu0
    %v1123 = vadd.f32 0.0, %v1122
    %v1124 = vpop.f32.mrb[0].mxu0
    %1125 = vmatprep.mubr.f32.mxu0 0.0
    %1126 = vmatmul.mubr.f32.gmra.mrb[0].mxu0 %v1037
    %v1127 = vpop.f32.mrb[0].mxu0
    %v1128 = vadd.f32 0.0, %v1127
    %v1129 = vpop.f32.mrb[0].mxu0
    %1130 = vmatprep.mubr.f32.mxu0 0.0
    %1131 = vmatmul.mubr.f32.gmra.mrb[0].mxu0 %v1038
    %v1132 = vpop.f32.mrb[0].mxu0
    %v1133 = vadd.f32 0.0, %v1132
    %v1134 = vpop.f32.mrb[0].mxu0
    %1135 = vmatprep.mubr.f32.mxu0 0.0
    %1136 = vmatmul.mubr.f32.gmra.mrb[0].mxu0 %v1039
    %v1137 = vpop.f32.mrb[0].mxu0
    %v1138 = vadd.f32 0.0, %v1137
    %v1139 = vpop.f32.mrb[0].mxu0
    %1140 = vmatprep.mubr.f32.mxu0 0.0
    %1141 = vmatmul.mubr.f32.gmra.mrb[0].mxu0 %v1040
    %v1142 = vpop.f32.mrb[0].mxu0
    %v1143 = vadd.f32 0.0, %v1142
    %v1144 = vpop.f32.mrb[0].mxu0
    %1145 = vmatprep.mubr.f32.mxu0 0.0
    %1146 = vmatmul.mubr.f32.gmra.mrb[0].mxu0 %v1041
    %v1147 = vpop.f32.mrb[0].mxu0
    %v1148 = vadd.f32 0.0, %v1147
    %v1149 = vpop.f32.mrb[0].mxu0
    %1150 = vmatprep.mubr.f32.mxu0 0.0
    %1151 = vmatmul.mubr.f32.gmra.mrb[0].mxu0 %v1042
    %v1152 = vpop.f32.mrb[0].mxu0
    %v1153 = vadd.f32 0.0, %v1152
    %v1154 = vpop.f32.mrb[0].mxu0
    %1155 = vmatprep.mubr.f32.mxu0 0.0
    %1156 = vmatmul.mubr.f32.gmra.mrb[0].mxu0 %v1043
    %v1157 = vpop.f32.mrb[0].mxu0
    %v1158 = vadd.f32 0.0, %v1157
    %v1159 = vpop.f32.mrb[0].mxu0
    %1160 = vmatprep.mubr.f32.mxu0 0.0
    %1161 = vmatmul.mubr.f32.gmra.mrb[0].mxu0 %v1044
    %v1162 = vpop.f32.mrb[0].mxu0
    %v1163 = vadd.f32 0.0, %v1162
    %v1164 = vpop.f32.mrb[0].mxu0
    %1165 = vmatprep.mubr.f32.mxu0 0.0
    %1166 = vmatmul.mubr.f32.gmra.mrb[0].mxu0 %v1045
    %v1167 = vpop.f32.mrb[0].mxu0
    %v1168 = vadd.f32 0.0, %v1167
    %v1169 = vpop.f32.mrb[0].mxu0
    %1170 = vmatprep.mubr.f32.mxu0 0.0
    %1171 = vmatmul.mubr.f32.gmra.mrb[0].mxu0 %v1046
    %v1172 = vpop.f32.mrb[0].mxu0
    %v1173 = vadd.f32 0.0, %v1172
    %v1174 = vpop.f32.mrb[0].mxu0
    %1175 = vmatprep.mubr.f32.mxu0 0.0
    %1176 = vmatmul.mubr.f32.gmra.mrb[0].mxu0 %v1047
    %v1177 = vpop.f32.mrb[0].mxu0
    %v1178 = vadd.f32 0.0, %v1177
    %v1179 = vpop.f32.mrb[0].mxu0
    %1180 = vmatprep.mubr.f32.mxu0 0.0
    %1181 = vmatmul.mubr.f32.gmra.mrb[0].mxu0 %v1048
    %v1182 = vpop.f32.mrb[0].mxu0
    %v1183 = vadd.f32 0.0, %v1182
    %v1184 = vpop.f32.mrb[0].mxu0
    %1185 = vmatprep.mubr.f32.mxu0 0.0
    %1186 = vmatmul.mubr.f32.gmra.mrb[0].mxu0 %v1049
    %v1187 = vpop.f32.mrb[0].mxu0
    %v1188 = vadd.f32 0.0, %v1187
    %v1189 = vpop.f32.mrb[0].mxu0
    %1190 = vmatprep.mubr.f32.mxu0 0.0
    %1191 = vmatmul.mubr.f32.gmra.mrb[0].mxu0 %v1050
    %v1192 = vpop.f32.mrb[0].mxu0
    %v1193 = vadd.f32 0.0, %v1192
    %v1194 = vpop.f32.mrb[0].mxu0
    %1195 = vdwg.mxu0
    %v1196 = vadd.f32 %v1118, 0.0
    %v1197 = vadd.f32 %v1123, 0.0
    %v1198 = vadd.f32 %v1128, 0.0
    %v1199 = vadd.f32 %v1133, 0.0
    %v1200 = vadd.f32 %v1138, 0.0
    %v1201 = vadd.f32 %v1143, 0.0
    %v1202 = vadd.f32 %v1148, 0.0
    %v1203 = vadd.f32 %v1153, 0.0
    %v1204 = vadd.f32 %v1158, 0.0
    %v1205 = vadd.f32 %v1163, 0.0
    %v1206 = vadd.f32 %v1168, 0.0
    %v1207 = vadd.f32 %v1173, 0.0
    %v1208 = vadd.f32 %v1178, 0.0
    %v1209 = vadd.f32 %v1183, 0.0
    %v1210 = vadd.f32 %v1188, 0.0
    %v1211 = vadd.f32 %v1193, 0.0
    %v1212 = vmax.f32 %v1196, %v1198
    %v1213 = vmax.f32 %v1197, %v1199
    %v1214 = vmax.f32 %v1212, %v1200
    %v1215 = vmax.f32 %v1213, %v1201
    %v1216 = vmax.f32 %v1214, %v1202
    %v1217 = vmax.f32 %v1215, %v1203
    %v1218 = vmax.f32 %v1216, %v1217
    %v1219 = vrot.slane %v1218, 4
    %v1220 = vmax.f32 %v1218, %v1219
    %v1221 = vrot.slane %v1220, 2
    %v1222 = vmax.f32 %v1220, %v1221
    %v1223 = vrot.slane %v1222, 1
    %v1224 = vmax.f32 %v1222, %v1223
    %v1225 = vmax.f32 %v1204, %v1206
    %v1226 = vmax.f32 %v1205, %v1207
    %v1227 = vmax.f32 %v1225, %v1208
    %v1228 = vmax.f32 %v1226, %v1209
    %v1229 = vmax.f32 %v1227, %v1210
    %v1230 = vmax.f32 %v1228, %v1211
    %v1231 = vmax.f32 %v1229, %v1230
    %v1232 = vrot.slane %v1231, 4
    %v1233 = vmax.f32 %v1231, %v1232
    %v1234 = vrot.slane %v1233, 2
    %v1235 = vmax.f32 %v1233, %v1234
    %v1236 = vrot.slane %v1235, 1
    %v1237 = vmax.f32 %v1235, %v1236
    %v1238 = vsub.f32 %v1196, %v1224
    %v1239 = vsub.f32 %v1197, %v1224
    %v1240 = vsub.f32 %v1198, %v1224
    %v1241 = vsub.f32 %v1199, %v1224
    %v1242 = vsub.f32 %v1200, %v1224
    %v1243 = vsub.f32 %v1201, %v1224
    %v1244 = vsub.f32 %v1202, %v1224
    %v1245 = vsub.f32 %v1203, %v1224
    %v1246 = vsub.f32 %v1204, %v1237
    %v1247 = vsub.f32 %v1205, %v1237
    %v1248 = vsub.f32 %v1206, %v1237
    %v1249 = vsub.f32 %v1207, %v1237
    %v1250 = vsub.f32 %v1208, %v1237
    %v1251 = vsub.f32 %v1209, %v1237
    %v1252 = vsub.f32 %v1210, %v1237
    %v1253 = vsub.f32 %v1211, %v1237
    %v1254 = vmul.f32 %v1238, 1.442695
    %v1255 = vpow.pop %v1254
    %v1256 = vmul.f32 %v1239, 1.442695
    %v1257 = vpow.pop %v1256
    %v1258 = vmul.f32 %v1240, 1.442695
    %v1259 = vpow.pop %v1258
    %v1260 = vmul.f32 %v1241, 1.442695
    %v1261 = vpow.pop %v1260
    %v1262 = vmul.f32 %v1242, 1.442695
    %v1263 = vpow.pop %v1262
    %v1264 = vmul.f32 %v1243, 1.442695
    %v1265 = vpow.pop %v1264
    %v1266 = vmul.f32 %v1244, 1.442695
    %v1267 = vpow.pop %v1266
    %v1268 = vmul.f32 %v1245, 1.442695
    %v1269 = vpow.pop %v1268
    %v1270 = vmul.f32 %v1246, 1.442695
    %v1271 = vpow.pop %v1270
    %v1272 = vmul.f32 %v1247, 1.442695
    %v1273 = vpow.pop %v1272
    %v1274 = vmul.f32 %v1248, 1.442695
    %v1275 = vpow.pop %v1274
    %v1276 = vmul.f32 %v1249, 1.442695
    %v1277 = vpow.pop %v1276
    %v1278 = vmul.f32 %v1250, 1.442695
    %v1279 = vpow.pop %v1278
    %v1280 = vmul.f32 %v1251, 1.442695
    %v1281 = vpow.pop %v1280
    %v1282 = vmul.f32 %v1252, 1.442695
    %v1283 = vpow.pop %v1282
    %v1284 = vmul.f32 %v1253, 1.442695
    %v1285 = vpow.pop %v1284
    %v1286 = vadd.f32 %v1255, %v1257
    %v1287 = vadd.f32 %v1286, %v1259
    %v1288 = vadd.f32 %v1287, %v1261
    %v1289 = vadd.f32 %v1288, %v1263
    %v1290 = vadd.f32 %v1289, %v1265
    %v1291 = vadd.f32 %v1290, %v1267
    %v1292 = vadd.f32 %v1291, %v1269
    %v1293 = vrot.slane %v1292, 4
    %v1294 = vadd.f32 %v1292, %v1293
    %v1295 = vrot.slane %v1294, 2
    %v1296 = vadd.f32 %v1294, %v1295
    %v1297 = vrot.slane %v1296, 1
    %v1298 = vadd.f32 %v1296, %v1297
    %v1299 = vadd.f32 %v1271, %v1273
    %v1300 = vadd.f32 %v1299, %v1275
    %v1301 = vadd.f32 %v1300, %v1277
    %v1302 = vadd.f32 %v1301, %v1279
    %v1303 = vadd.f32 %v1302, %v1281
    %v1304 = vadd.f32 %v1303, %v1283
    %v1305 = vadd.f32 %v1304, %v1285
    %v1306 = vrot.slane %v1305, 4
    %v1307 = vadd.f32 %v1305, %v1306
    %v1308 = vrot.slane %v1307, 2
    %v1309 = vadd.f32 %v1307, %v1308
    %v1310 = vrot.slane %v1309, 1
    %v1311 = vadd.f32 %v1309, %v1310
    %v1312 = vrcp.pop %v1298
    %v1313 = vmul.f32 %v1255, %v1312
    %v1314 = vmul.f32 %v1257, %v1312
    %v1315 = vmul.f32 %v1259, %v1312
    %v1316 = vmul.f32 %v1261, %v1312
    %v1317 = vmul.f32 %v1263, %v1312
    %v1318 = vmul.f32 %v1265, %v1312
    %v1319 = vmul.f32 %v1267, %v1312
    %v1320 = vmul.f32 %v1269, %v1312
    %v1321 = vrcp.pop %v1311
    %v1322 = vmul.f32 %v1271, %v1321
    %v1323 = vmul.f32 %v1273, %v1321
    %v1324 = vmul.f32 %v1275, %v1321
    %v1325 = vmul.f32 %v1277, %v1321
    %v1326 = vmul.f32 %v1279, %v1321
    %v1327 = vmul.f32 %v1281, %v1321
    %v1328 = vmul.f32 %v1283, %v1321
    %v1329 = vmul.f32 %v1285, %v1321
    %v1330 = vmul.f32 %v1313, %v884
    %v1331 = vmul.f32 %v1314, %v885
    %v1332 = vmul.f32 %v1315, %v886
    %v1333 = vmul.f32 %v1316, %v887
    %v1334 = vmul.f32 %v1317, %v888
    %v1335 = vmul.f32 %v1318, %v889
    %v1336 = vmul.f32 %v1319, %v890
    %v1337 = vmul.f32 %v1320, %v891
    %v1338 = vmul.f32 %v1322, %v892
    %v1339 = vmul.f32 %v1323, %v893
    %v1340 = vmul.f32 %v1324, %v894
    %v1341 = vmul.f32 %v1325, %v895
    %v1342 = vmul.f32 %v1326, %v896
    %v1343 = vmul.f32 %v1327, %v897
    %v1344 = vmul.f32 %v1328, %v898
    %v1345 = vmul.f32 %v1329, %v899
    %v1346 = vadd.f32 %v1330, %v1331
    %v1347 = vadd.f32 %v1346, %v1332
    %v1348 = vadd.f32 %v1347, %v1333
    %v1349 = vadd.f32 %v1348, %v1334
    %v1350 = vadd.f32 %v1349, %v1335
    %v1351 = vadd.f32 %v1350, %v1336
    %v1352 = vadd.f32 %v1351, %v1337
    %v1353 = vrot.slane %v1352, 4
    %v1354 = vadd.f32 %v1352, %v1353
    %v1355 = vrot.slane %v1354, 2
    %v1356 = vadd.f32 %v1354, %v1355
    %v1357 = vrot.slane %v1356, 1
    %v1358 = vadd.f32 %v1356, %v1357
    %v1359 = vadd.f32 %v1338, %v1339
    %v1360 = vadd.f32 %v1359, %v1340
    %v1361 = vadd.f32 %v1360, %v1341
    %v1362 = vadd.f32 %v1361, %v1342
    %v1363 = vadd.f32 %v1362, %v1343
    %v1364 = vadd.f32 %v1363, %v1344
    %v1365 = vadd.f32 %v1364, %v1345
    %v1366 = vrot.slane %v1365, 4
    %v1367 = vadd.f32 %v1365, %v1366
    %v1368 = vrot.slane %v1367, 2
    %v1369 = vadd.f32 %v1367, %v1368
    %v1370 = vrot.slane %v1369, 1
    %v1371 = vadd.f32 %v1369, %v1370
    %v1372 = vmul.f32 %v1358, %v1358
    %v1373 = vmul.f32 %v1371, %v1371
    %v1376 = vsel %vm932, %v1373, %v1372
    %1378 = vmatprep.subr.mxu0 0.0
    %1379 = vmatpush1.msra.mxu0 %v45
    %1380 = vmatprep.subr.mxu0 0.0
    %1381 = vmatpush1.msra.mxu0 %v46
    %1382 = vmatprep.subr.mxu0 0.0
    %1383 = vmatpush1.msra.mxu0 %v47
    %1384 = vmatprep.subr.mxu0 0.0
    %1385 = vmatpush1.msra.mxu0 %v48
    %1386 = vmatprep.subr.mxu0 0.0
    %1387 = vmatpush1.msra.mxu0 %v49
    %1388 = vmatprep.subr.mxu0 0.0
    %1389 = vmatpush1.msra.mxu0 %v50
    %1390 = vmatprep.subr.mxu0 0.0
    %1391 = vmatpush1.msra.mxu0 %v51
    %1392 = vmatprep.subr.mxu0 0.0
    %1393 = vmatpush1.msra.mxu0 %v52
    %1394 = vmatprep.subr.mxu0 0.0
    %1395 = vmatpush1.msra.mxu0 %v53
    %1396 = vmatprep.subr.mxu0 0.0
    %1397 = vmatpush1.msra.mxu0 %v54
    %1398 = vmatprep.subr.mxu0 0.0
    %1399 = vmatpush1.msra.mxu0 %v55
    %1400 = vmatprep.subr.mxu0 0.0
    %1401 = vmatpush1.msra.mxu0 %v56
    %1402 = vmatprep.subr.mxu0 0.0
    %1403 = vmatpush1.msra.mxu0 %v57
    %1404 = vmatprep.subr.mxu0 0.0
    %1405 = vmatpush1.msra.mxu0 %v58
    %1406 = vmatprep.subr.mxu0 0.0
    %1407 = vmatpush1.msra.mxu0 %v59
    %1408 = vmatprep.subr.mxu0 0.0
    %1409 = vmatpush1.msra.mxu0 %v60
    %1410 = vmatprep.subr.mxu0 0.0
    %1411 = vmatpush1.msra.mxu0 0.0
    %1412 = vmatprep.subr.mxu0 0.0
    %1413 = vmatpush1.msra.mxu0 0.0
    %1414 = vmatprep.subr.mxu0 0.0
    %1415 = vmatpush1.msra.mxu0 0.0
    %1416 = vmatprep.subr.mxu0 0.0
    %1417 = vmatpush1.msra.mxu0 0.0
    %1418 = vmatprep.subr.mxu0 0.0
    %1419 = vmatpush1.msra.mxu0 0.0
    %1420 = vmatprep.subr.mxu0 0.0
    %1421 = vmatpush1.msra.mxu0 0.0
    %1422 = vmatprep.subr.mxu0 0.0
    %1423 = vmatpush1.msra.mxu0 0.0
    %1424 = vmatprep.subr.mxu0 0.0
    %1425 = vmatpush1.msra.mxu0 0.0
    %1426 = vmatprep.subr.mxu0 0.0
    %1427 = vmatpush1.msra.mxu0 0.0
    %1428 = vmatprep.subr.mxu0 0.0
    %1429 = vmatpush1.msra.mxu0 0.0
    %1430 = vmatprep.subr.mxu0 0.0
    %1431 = vmatpush1.msra.mxu0 0.0
    %1432 = vmatprep.subr.mxu0 0.0
    %1433 = vmatpush1.msra.mxu0 0.0
    %1434 = vmatprep.subr.mxu0 0.0
    %1435 = vmatpush1.msra.mxu0 0.0
    %1436 = vmatprep.subr.mxu0 0.0
    %1437 = vmatpush1.msra.mxu0 0.0
    %1438 = vmatprep.subr.mxu0 0.0
    %1439 = vmatpush1.msra.mxu0 0.0
    %1440 = vmatprep.subr.mxu0 0.0
    %1441 = vmatpush1.msra.mxu0 0.0
    %1442 = vmatprep.mubr.f32.mxu0 0.0
    %1443 = vmatmul.mubr.f32.gmra.mrb[0].mxu0 %v1376
    %v1444 = vpop.f32.mrb[0].mxu0
    %v1445 = vadd.f32 0.0, %v1444
    %v1446 = vpop.f32.mrb[0].mxu0
    %1447 = vdwg.mxu0
    %v1448 = vrsqrt.pop %v1445
    %v1449 = vmul.f32 %v1445, %v1448
    %vm1450 = vcmp.eq.f32.partialorder %v1445, inf
    %v1451 = vsel %vm1450, %v1445, %v1449
    %vm1452 = vcmp.eq.f32.partialorder %v1445, 0.0
    %v1453 = vand.u32 %v1445, 2147483648
    %v1454 = vsel %vm1452, %v1453, %v1451
    %v1456 = vrot.slane %v1454, 1
    %v1459 = vmul.f32 %v1358, %v1454
    %v1460 = vmul.f32 %v1371, %v1456
    %v1461 = vadd.f32 %v1445, 1.0
    %v1463 = vrot.slane %v1461, 1
    %v1466 = vrcp.pop %v1461
    %v1467 = vmul.f32 %v1459, %v1466
    %v1468 = vrcp.pop %v1463
    %v1469 = vmul.f32 %v1460, %v1468
    %v1470 = vlaneseq
    %v1471 = vshrl.u32 %v1470, 7
    %v1472 = vsub.s32 0, %v1471
    %v1473 = vrot.slane %v1467, %v1472
    %v1474 = vlaneseq
    %v1475 = vshrl.u32 %v1474, 7
    %v1476 = vsub.s32 0, %v1475
    %v1477 = vrot.slane %v1469, %v1476
    %v1478 = vmul.f32 %v884, %v1473
    %v1479 = vmul.f32 %v885, %v1473
    %v1480 = vmul.f32 %v886, %v1473
    %v1481 = vmul.f32 %v887, %v1473
    %v1482 = vmul.f32 %v888, %v1473
    %v1483 = vmul.f32 %v889, %v1473
    %v1484 = vmul.f32 %v890, %v1473
    %v1485 = vmul.f32 %v891, %v1473
    %v1486 = vmul.f32 %v892, %v1477
    %v1487 = vmul.f32 %v893, %v1477
    %v1488 = vmul.f32 %v894, %v1477
    %v1489 = vmul.f32 %v895, %v1477
    %v1490 = vmul.f32 %v896, %v1477
    %v1491 = vmul.f32 %v897, %v1477
    %v1492 = vmul.f32 %v898, %v1477
    %v1493 = vmul.f32 %v899, %v1477
    %1494 = vmatprep.subr.mxu0 0.0
    %1495 = vmatpush1.msra.mxu0 %v45
    %1496 = vmatprep.subr.mxu0 0.0
    %1497 = vmatpush1.msra.mxu0 %v46
    %1498 = vmatprep.subr.mxu0 0.0
    %1499 = vmatpush1.msra.mxu0 %v47
    %1500 = vmatprep.subr.mxu0 0.0
    %1501 = vmatpush1.msra.mxu0 %v48
    %1502 = vmatprep.subr.mxu0 0.0
    %1503 = vmatpush1.msra.mxu0 %v49
    %1504 = vmatprep.subr.mxu0 0.0
    %1505 = vmatpush1.msra.mxu0 %v50
    %1506 = vmatprep.subr.mxu0 0.0
    %1507 = vmatpush1.msra.mxu0 %v51
    %1508 = vmatprep.subr.mxu0 0.0
    %1509 = vmatpush1.msra.mxu0 %v52
    %1510 = vmatprep.subr.mxu0 0.0
    %1511 = vmatpush1.msra.mxu0 %v53
    %1512 = vmatprep.subr.mxu0 0.0
    %1513 = vmatpush1.msra.mxu0 %v54
    %1514 = vmatprep.subr.mxu0 0.0
    %1515 = vmatpush1.msra.mxu0 %v55
    %1516 = vmatprep.subr.mxu0 0.0
    %1517 = vmatpush1.msra.mxu0 %v56
    %1518 = vmatprep.subr.mxu0 0.0
    %1519 = vmatpush1.msra.mxu0 %v57
    %1520 = vmatprep.subr.mxu0 0.0
    %1521 = vmatpush1.msra.mxu0 %v58
    %1522 = vmatprep.subr.mxu0 0.0
    %1523 = vmatpush1.msra.mxu0 %v59
    %1524 = vmatprep.subr.mxu0 0.0
    %1525 = vmatpush1.msra.mxu0 %v60
    %1526 = vmatprep.subr.mxu0 0.0
    %1527 = vmatpush1.msra.mxu0 0.0
    %1528 = vmatprep.subr.mxu0 0.0
    %1529 = vmatpush1.msra.mxu0 0.0
    %1530 = vmatprep.subr.mxu0 0.0
    %1531 = vmatpush1.msra.mxu0 0.0
    %1532 = vmatprep.subr.mxu0 0.0
    %1533 = vmatpush1.msra.mxu0 0.0
    %1534 = vmatprep.subr.mxu0 0.0
    %1535 = vmatpush1.msra.mxu0 0.0
    %1536 = vmatprep.subr.mxu0 0.0
    %1537 = vmatpush1.msra.mxu0 0.0
    %1538 = vmatprep.subr.mxu0 0.0
    %1539 = vmatpush1.msra.mxu0 0.0
    %1540 = vmatprep.subr.mxu0 0.0
    %1541 = vmatpush1.msra.mxu0 0.0
    %1542 = vmatprep.subr.mxu0 0.0
    %1543 = vmatpush1.msra.mxu0 0.0
    %1544 = vmatprep.subr.mxu0 0.0
    %1545 = vmatpush1.msra.mxu0 0.0
    %1546 = vmatprep.subr.mxu0 0.0
    %1547 = vmatpush1.msra.mxu0 0.0
    %1548 = vmatprep.subr.mxu0 0.0
    %1549 = vmatpush1.msra.mxu0 0.0
    %1550 = vmatprep.subr.mxu0 0.0
    %1551 = vmatpush1.msra.mxu0 0.0
    %1552 = vmatprep.subr.mxu0 0.0
    %1553 = vmatpush1.msra.mxu0 0.0
    %1554 = vmatprep.subr.mxu0 0.0
    %1555 = vmatpush1.msra.mxu0 0.0
    %1556 = vmatprep.subr.mxu0 0.0
    %1557 = vmatpush1.msra.mxu0 0.0
    %1558 = vmatprep.mubr.f32.mxu0 0.0
    %1559 = vmatmul.mubr.f32.gmra.mrb[0].mxu0 %v1478
    %v1560 = vpop.f32.mrb[0].mxu0
    %v1561 = vadd.f32 0.0, %v1560
    %v1562 = vpop.f32.mrb[0].mxu0
    %1563 = vmatprep.mubr.f32.mxu0 0.0
    %1564 = vmatmul.mubr.f32.gmra.mrb[0].mxu0 %v1479
    %v1565 = vpop.f32.mrb[0].mxu0
    %v1566 = vadd.f32 0.0, %v1565
    %v1567 = vpop.f32.mrb[0].mxu0
    %1568 = vmatprep.mubr.f32.mxu0 0.0
    %1569 = vmatmul.mubr.f32.gmra.mrb[0].mxu0 %v1480
    %v1570 = vpop.f32.mrb[0].mxu0
    %v1571 = vadd.f32 0.0, %v1570
    %v1572 = vpop.f32.mrb[0].mxu0
    %1573 = vmatprep.mubr.f32.mxu0 0.0
    %1574 = vmatmul.mubr.f32.gmra.mrb[0].mxu0 %v1481
    %v1575 = vpop.f32.mrb[0].mxu0
    %v1576 = vadd.f32 0.0, %v1575
    %v1577 = vpop.f32.mrb[0].mxu0
    %1578 = vmatprep.mubr.f32.mxu0 0.0
    %1579 = vmatmul.mubr.f32.gmra.mrb[0].mxu0 %v1482
    %v1580 = vpop.f32.mrb[0].mxu0
    %v1581 = vadd.f32 0.0, %v1580
    %v1582 = vpop.f32.mrb[0].mxu0
    %1583 = vmatprep.mubr.f32.mxu0 0.0
    %1584 = vmatmul.mubr.f32.gmra.mrb[0].mxu0 %v1483
    %v1585 = vpop.f32.mrb[0].mxu0
    %v1586 = vadd.f32 0.0, %v1585
    %v1587 = vpop.f32.mrb[0].mxu0
    %1588 = vmatprep.mubr.f32.mxu0 0.0
    %1589 = vmatmul.mubr.f32.gmra.mrb[0].mxu0 %v1484
    %v1590 = vpop.f32.mrb[0].mxu0
    %v1591 = vadd.f32 0.0, %v1590
    %v1592 = vpop.f32.mrb[0].mxu0
    %1593 = vmatprep.mubr.f32.mxu0 0.0
    %1594 = vmatmul.mubr.f32.gmra.mrb[0].mxu0 %v1485
    %v1595 = vpop.f32.mrb[0].mxu0
    %v1596 = vadd.f32 0.0, %v1595
    %v1597 = vpop.f32.mrb[0].mxu0
    %1598 = vmatprep.mubr.f32.mxu0 0.0
    %1599 = vmatmul.mubr.f32.gmra.mrb[0].mxu0 %v1486
    %v1600 = vpop.f32.mrb[0].mxu0
    %v1601 = vadd.f32 0.0, %v1600
    %v1602 = vpop.f32.mrb[0].mxu0
    %1603 = vmatprep.mubr.f32.mxu0 0.0
    %1604 = vmatmul.mubr.f32.gmra.mrb[0].mxu0 %v1487
    %v1605 = vpop.f32.mrb[0].mxu0
    %v1606 = vadd.f32 0.0, %v1605
    %v1607 = vpop.f32.mrb[0].mxu0
    %1608 = vmatprep.mubr.f32.mxu0 0.0
    %1609 = vmatmul.mubr.f32.gmra.mrb[0].mxu0 %v1488
    %v1610 = vpop.f32.mrb[0].mxu0
    %v1611 = vadd.f32 0.0, %v1610
    %v1612 = vpop.f32.mrb[0].mxu0
    %1613 = vmatprep.mubr.f32.mxu0 0.0
    %1614 = vmatmul.mubr.f32.gmra.mrb[0].mxu0 %v1489
    %v1615 = vpop.f32.mrb[0].mxu0
    %v1616 = vadd.f32 0.0, %v1615
    %v1617 = vpop.f32.mrb[0].mxu0
    %1618 = vmatprep.mubr.f32.mxu0 0.0
    %1619 = vmatmul.mubr.f32.gmra.mrb[0].mxu0 %v1490
    %v1620 = vpop.f32.mrb[0].mxu0
    %v1621 = vadd.f32 0.0, %v1620
    %v1622 = vpop.f32.mrb[0].mxu0
    %1623 = vmatprep.mubr.f32.mxu0 0.0
    %1624 = vmatmul.mubr.f32.gmra.mrb[0].mxu0 %v1491
    %v1625 = vpop.f32.mrb[0].mxu0
    %v1626 = vadd.f32 0.0, %v1625
    %v1627 = vpop.f32.mrb[0].mxu0
    %1628 = vmatprep.mubr.f32.mxu0 0.0
    %1629 = vmatmul.mubr.f32.gmra.mrb[0].mxu0 %v1492
    %v1630 = vpop.f32.mrb[0].mxu0
    %v1631 = vadd.f32 0.0, %v1630
    %v1632 = vpop.f32.mrb[0].mxu0
    %1633 = vmatprep.mubr.f32.mxu0 0.0
    %1634 = vmatmul.mubr.f32.gmra.mrb[0].mxu0 %v1493
    %v1635 = vpop.f32.mrb[0].mxu0
    %v1636 = vadd.f32 0.0, %v1635
    %v1637 = vpop.f32.mrb[0].mxu0
    %1638 = vdwg.mxu0
    %v1639 = vadd.f32 %v1196, %v1561
    %v1640 = vadd.f32 %v1197, %v1566
    %v1641 = vadd.f32 %v1198, %v1571
    %v1642 = vadd.f32 %v1199, %v1576
    %v1643 = vadd.f32 %v1200, %v1581
    %v1644 = vadd.f32 %v1201, %v1586
    %v1645 = vadd.f32 %v1202, %v1591
    %v1646 = vadd.f32 %v1203, %v1596
    %v1647 = vadd.f32 %v1204, %v1601
    %v1648 = vadd.f32 %v1205, %v1606
    %v1649 = vadd.f32 %v1206, %v1611
    %v1650 = vadd.f32 %v1207, %v1616
    %v1651 = vadd.f32 %v1208, %v1621
    %v1652 = vadd.f32 %v1209, %v1626
    %v1653 = vadd.f32 %v1210, %v1631
    %v1654 = vadd.f32 %v1211, %v1636
    %v1655 = vmax.f32 %v1639, %v1641
    %v1656 = vmax.f32 %v1640, %v1642
    %v1657 = vmax.f32 %v1655, %v1643
    %v1658 = vmax.f32 %v1656, %v1644
    %v1659 = vmax.f32 %v1657, %v1645
    %v1660 = vmax.f32 %v1658, %v1646
    %v1661 = vmax.f32 %v1659, %v1660
    %v1662 = vrot.slane %v1661, 4
    %v1663 = vmax.f32 %v1661, %v1662
    %v1664 = vrot.slane %v1663, 2
    %v1665 = vmax.f32 %v1663, %v1664
    %v1666 = vrot.slane %v1665, 1
    %v1667 = vmax.f32 %v1665, %v1666
    %v1668 = vmax.f32 %v1647, %v1649
    %v1669 = vmax.f32 %v1648, %v1650
    %v1670 = vmax.f32 %v1668, %v1651
    %v1671 = vmax.f32 %v1669, %v1652
    %v1672 = vmax.f32 %v1670, %v1653
    %v1673 = vmax.f32 %v1671, %v1654
    %v1674 = vmax.f32 %v1672, %v1673
    %v1675 = vrot.slane %v1674, 4
    %v1676 = vmax.f32 %v1674, %v1675
    %v1677 = vrot.slane %v1676, 2
    %v1678 = vmax.f32 %v1676, %v1677
    %v1679 = vrot.slane %v1678, 1
    %v1680 = vmax.f32 %v1678, %v1679
    %v1681 = vsub.f32 %v1639, %v1667
    %v1682 = vsub.f32 %v1640, %v1667
    %v1683 = vsub.f32 %v1641, %v1667
    %v1684 = vsub.f32 %v1642, %v1667
    %v1685 = vsub.f32 %v1643, %v1667
    %v1686 = vsub.f32 %v1644, %v1667
    %v1687 = vsub.f32 %v1645, %v1667
    %v1688 = vsub.f32 %v1646, %v1667
    %v1689 = vsub.f32 %v1647, %v1680
    %v1690 = vsub.f32 %v1648, %v1680
    %v1691 = vsub.f32 %v1649, %v1680
    %v1692 = vsub.f32 %v1650, %v1680
    %v1693 = vsub.f32 %v1651, %v1680
    %v1694 = vsub.f32 %v1652, %v1680
    %v1695 = vsub.f32 %v1653, %v1680
    %v1696 = vsub.f32 %v1654, %v1680
    %v1697 = vmul.f32 %v1681, 1.442695
    %v1698 = vpow.pop %v1697
    %v1699 = vmul.f32 %v1682, 1.442695
    %v1700 = vpow.pop %v1699
    %v1701 = vmul.f32 %v1683, 1.442695
    %v1702 = vpow.pop %v1701
    %v1703 = vmul.f32 %v1684, 1.442695
    %v1704 = vpow.pop %v1703
    %v1705 = vmul.f32 %v1685, 1.442695
    %v1706 = vpow.pop %v1705
    %v1707 = vmul.f32 %v1686, 1.442695
    %v1708 = vpow.pop %v1707
    %v1709 = vmul.f32 %v1687, 1.442695
    %v1710 = vpow.pop %v1709
    %v1711 = vmul.f32 %v1688, 1.442695
    %v1712 = vpow.pop %v1711
    %v1713 = vmul.f32 %v1689, 1.442695
    %v1714 = vpow.pop %v1713
    %v1715 = vmul.f32 %v1690, 1.442695
    %v1716 = vpow.pop %v1715
    %v1717 = vmul.f32 %v1691, 1.442695
    %v1718 = vpow.pop %v1717
    %v1719 = vmul.f32 %v1692, 1.442695
    %v1720 = vpow.pop %v1719
    %v1721 = vmul.f32 %v1693, 1.442695
    %v1722 = vpow.pop %v1721
    %v1723 = vmul.f32 %v1694, 1.442695
    %v1724 = vpow.pop %v1723
    %v1725 = vmul.f32 %v1695, 1.442695
    %v1726 = vpow.pop %v1725
    %v1727 = vmul.f32 %v1696, 1.442695
    %v1728 = vpow.pop %v1727
    %v1729 = vadd.f32 %v1698, %v1700
    %v1730 = vadd.f32 %v1729, %v1702
    %v1731 = vadd.f32 %v1730, %v1704
    %v1732 = vadd.f32 %v1731, %v1706
    %v1733 = vadd.f32 %v1732, %v1708
    %v1734 = vadd.f32 %v1733, %v1710
    %v1735 = vadd.f32 %v1734, %v1712
    %v1736 = vrot.slane %v1735, 4
    %v1737 = vadd.f32 %v1735, %v1736
    %v1738 = vrot.slane %v1737, 2
    %v1739 = vadd.f32 %v1737, %v1738
    %v1740 = vrot.slane %v1739, 1
    %v1741 = vadd.f32 %v1739, %v1740
    %v1742 = vadd.f32 %v1714, %v1716
    %v1743 = vadd.f32 %v1742, %v1718
    %v1744 = vadd.f32 %v1743, %v1720
    %v1745 = vadd.f32 %v1744, %v1722
    %v1746 = vadd.f32 %v1745, %v1724
    %v1747 = vadd.f32 %v1746, %v1726
    %v1748 = vadd.f32 %v1747, %v1728
    %v1749 = vrot.slane %v1748, 4
    %v1750 = vadd.f32 %v1748, %v1749
    %v1751 = vrot.slane %v1750, 2
    %v1752 = vadd.f32 %v1750, %v1751
    %v1753 = vrot.slane %v1752, 1
    %v1754 = vadd.f32 %v1752, %v1753
    %v1755 = vrcp.pop %v1741
    %v1756 = vmul.f32 %v1698, %v1755
    %v1757 = vmul.f32 %v1700, %v1755
    %v1758 = vmul.f32 %v1702, %v1755
    %v1759 = vmul.f32 %v1704, %v1755
    %v1760 = vmul.f32 %v1706, %v1755
    %v1761 = vmul.f32 %v1708, %v1755
    %v1762 = vmul.f32 %v1710, %v1755
    %v1763 = vmul.f32 %v1712, %v1755
    %v1764 = vrcp.pop %v1754
    %v1765 = vmul.f32 %v1714, %v1764
    %v1766 = vmul.f32 %v1716, %v1764
    %v1767 = vmul.f32 %v1718, %v1764
    %v1768 = vmul.f32 %v1720, %v1764
    %v1769 = vmul.f32 %v1722, %v1764
    %v1770 = vmul.f32 %v1724, %v1764
    %v1771 = vmul.f32 %v1726, %v1764
    %v1772 = vmul.f32 %v1728, %v1764
    %v1773 = vmul.f32 %v1756, %v884
    %v1774 = vmul.f32 %v1757, %v885
    %v1775 = vmul.f32 %v1758, %v886
    %v1776 = vmul.f32 %v1759, %v887
    %v1777 = vmul.f32 %v1760, %v888
    %v1778 = vmul.f32 %v1761, %v889
    %v1779 = vmul.f32 %v1762, %v890
    %v1780 = vmul.f32 %v1763, %v891
    %v1781 = vmul.f32 %v1765, %v892
    %v1782 = vmul.f32 %v1766, %v893
    %v1783 = vmul.f32 %v1767, %v894
    %v1784 = vmul.f32 %v1768, %v895
    %v1785 = vmul.f32 %v1769, %v896
    %v1786 = vmul.f32 %v1770, %v897
    %v1787 = vmul.f32 %v1771, %v898
    %v1788 = vmul.f32 %v1772, %v899
    %v1789 = vadd.f32 %v1773, %v1774
    %v1790 = vadd.f32 %v1789, %v1775
    %v1791 = vadd.f32 %v1790, %v1776
    %v1792 = vadd.f32 %v1791, %v1777
    %v1793 = vadd.f32 %v1792, %v1778
    %v1794 = vadd.f32 %v1793, %v1779
    %v1795 = vadd.f32 %v1794, %v1780
    %v1796 = vrot.slane %v1795, 4
    %v1797 = vadd.f32 %v1795, %v1796
    %v1798 = vrot.slane %v1797, 2
    %v1799 = vadd.f32 %v1797, %v1798
    %v1800 = vrot.slane %v1799, 1
    %v1801 = vadd.f32 %v1799, %v1800
    %v1802 = vadd.f32 %v1781, %v1782
    %v1803 = vadd.f32 %v1802, %v1783
    %v1804 = vadd.f32 %v1803, %v1784
    %v1805 = vadd.f32 %v1804, %v1785
    %v1806 = vadd.f32 %v1805, %v1786
    %v1807 = vadd.f32 %v1806, %v1787
    %v1808 = vadd.f32 %v1807, %v1788
    %v1809 = vrot.slane %v1808, 4
    %v1810 = vadd.f32 %v1808, %v1809
    %v1811 = vrot.slane %v1810, 2
    %v1812 = vadd.f32 %v1810, %v1811
    %v1813 = vrot.slane %v1812, 1
    %v1814 = vadd.f32 %v1812, %v1813
    %v1815 = vmul.f32 %v1801, %v1801
    %v1816 = vmul.f32 %v1814, %v1814
    %v1819 = vsel %vm932, %v1816, %v1815
    %1821 = vmatprep.subr.mxu0 0.0
    %1822 = vmatpush1.msra.mxu0 %v45
    %1823 = vmatprep.subr.mxu0 0.0
    %1824 = vmatpush1.msra.mxu0 %v46
    %1825 = vmatprep.subr.mxu0 0.0
    %1826 = vmatpush1.msra.mxu0 %v47
    %1827 = vmatprep.subr.mxu0 0.0
    %1828 = vmatpush1.msra.mxu0 %v48
    %1829 = vmatprep.subr.mxu0 0.0
    %1830 = vmatpush1.msra.mxu0 %v49
    %1831 = vmatprep.subr.mxu0 0.0
    %1832 = vmatpush1.msra.mxu0 %v50
    %1833 = vmatprep.subr.mxu0 0.0
    %1834 = vmatpush1.msra.mxu0 %v51
    %1835 = vmatprep.subr.mxu0 0.0
    %1836 = vmatpush1.msra.mxu0 %v52
    %1837 = vmatprep.subr.mxu0 0.0
    %1838 = vmatpush1.msra.mxu0 %v53
    %1839 = vmatprep.subr.mxu0 0.0
    %1840 = vmatpush1.msra.mxu0 %v54
    %1841 = vmatprep.subr.mxu0 0.0
    %1842 = vmatpush1.msra.mxu0 %v55
    %1843 = vmatprep.subr.mxu0 0.0
    %1844 = vmatpush1.msra.mxu0 %v56
    %1845 = vmatprep.subr.mxu0 0.0
    %1846 = vmatpush1.msra.mxu0 %v57
    %1847 = vmatprep.subr.mxu0 0.0
    %1848 = vmatpush1.msra.mxu0 %v58
    %1849 = vmatprep.subr.mxu0 0.0
    %1850 = vmatpush1.msra.mxu0 %v59
    %1851 = vmatprep.subr.mxu0 0.0
    %1852 = vmatpush1.msra.mxu0 %v60
    %1853 = vmatprep.subr.mxu0 0.0
    %1854 = vmatpush1.msra.mxu0 0.0
    %1855 = vmatprep.subr.mxu0 0.0
    %1856 = vmatpush1.msra.mxu0 0.0
    %1857 = vmatprep.subr.mxu0 0.0
    %1858 = vmatpush1.msra.mxu0 0.0
    %1859 = vmatprep.subr.mxu0 0.0
    %1860 = vmatpush1.msra.mxu0 0.0
    %1861 = vmatprep.subr.mxu0 0.0
    %1862 = vmatpush1.msra.mxu0 0.0
    %1863 = vmatprep.subr.mxu0 0.0
    %1864 = vmatpush1.msra.mxu0 0.0
    %1865 = vmatprep.subr.mxu0 0.0
    %1866 = vmatpush1.msra.mxu0 0.0
    %1867 = vmatprep.subr.mxu0 0.0
    %1868 = vmatpush1.msra.mxu0 0.0
    %1869 = vmatprep.subr.mxu0 0.0
    %1870 = vmatpush1.msra.mxu0 0.0
    %1871 = vmatprep.subr.mxu0 0.0
    %1872 = vmatpush1.msra.mxu0 0.0
    %1873 = vmatprep.subr.mxu0 0.0
    %1874 = vmatpush1.msra.mxu0 0.0
    %1875 = vmatprep.subr.mxu0 0.0
    %1876 = vmatpush1.msra.mxu0 0.0
    %1877 = vmatprep.subr.mxu0 0.0
    %1878 = vmatpush1.msra.mxu0 0.0
    %1879 = vmatprep.subr.mxu0 0.0
    %1880 = vmatpush1.msra.mxu0 0.0
    %1881 = vmatprep.subr.mxu0 0.0
    %1882 = vmatpush1.msra.mxu0 0.0
    %1883 = vmatprep.subr.mxu0 0.0
    %1884 = vmatpush1.msra.mxu0 0.0
    %1885 = vmatprep.mubr.f32.mxu0 0.0
    %1886 = vmatmul.mubr.f32.gmra.mrb[0].mxu0 %v1819
    %v1887 = vpop.f32.mrb[0].mxu0
    %v1888 = vadd.f32 0.0, %v1887
    %v1889 = vpop.f32.mrb[0].mxu0
    %1890 = vdwg.mxu0
    %v1891 = vrsqrt.pop %v1888
    %v1892 = vmul.f32 %v1888, %v1891
    %vm1893 = vcmp.eq.f32.partialorder %v1888, inf
    %v1894 = vsel %vm1893, %v1888, %v1892
    %vm1895 = vcmp.eq.f32.partialorder %v1888, 0.0
    %v1896 = vand.u32 %v1888, 2147483648
    %v1897 = vsel %vm1895, %v1896, %v1894
    %v1899 = vrot.slane %v1897, 1
    %v1902 = vmul.f32 %v1801, %v1897
    %v1903 = vmul.f32 %v1814, %v1899
    %v1904 = vadd.f32 %v1888, 1.0
    %v1906 = vrot.slane %v1904, 1
    %v1909 = vrcp.pop %v1904
    %v1910 = vmul.f32 %v1902, %v1909
    %v1911 = vrcp.pop %v1906
    %v1912 = vmul.f32 %v1903, %v1911
    %v1915 = vrot.slane %v1912, 7
    %v1916 = vsel %vm932, %v1915, %v1910
    %1918 = vst [vmem:[#allocation5] sm:$0x3] %v1916
    // Predicated region
    $region18: #{tpu_custom_call.1} parent=1 // pred_check
      _
    $region19: #{tpu_custom_call.1} parent=1 // pred_check_branch
      %1920 = sbr.rel (0) target = $region21
    $region20: #{tpu_custom_call.1} parent=1 // pred_region
      %s1922 = ssub.s32 32, 32
      %1923 = vsyncadd [#allocation4], %s1922
      %s1925 = sshll.u32 [#allocation5], 4
      %s1926 = int_to_ptr.vmem [resolvable:$true] %s1925
      %1928 = dma.vmem_to_hbm [thread:$0]  %s1926, 32, %s3, [#allocation4]
    $region21: #{tpu_custom_call.1} parent=1 // pred_fallthru
      _
    // Predicated region
    $region22: #{tpu_custom_call.1} parent=1 // pred_check
      _
    $region23: #{tpu_custom_call.1} parent=1 // pred_check_branch
      %1930 = sbr.rel (0) target = $region25
    $region24: #{tpu_custom_call.1} parent=1 // pred_region
      %1931 = dma.done [#allocation4], 32
    $region25: #{tpu_custom_call.1} parent=1 // pred_fallthru
      _
    %1932 = vsyncpa [#allocation3], 1
    %1933 = vsyncpa [#allocation4], 1

</llo_original>
